<compile_context>
chip_gen: v6e
topology: v6e:2x2x1
jax: 0.10.0
libtpu: 0.0.40
codegen_flags: <defaults>
</compile_context>

<pallas_src>
import math

import jax
import jax.numpy as jnp
from jax import lax
from jax.experimental import pallas as pl
from jax.experimental.pallas import tpu as pltpu


def make_nca_attention_kernel(n_heads: int, head_dim: int):

    def kernel(x_ref, u_ref, prob_ref,
               w_taps_ref, bc1_ref, wc2_ref, bc2_ref,
               wu1_ref, bu1_ref, wu2_ref, bu2_ref,
               w_qkv_ref, b_qkv_ref, w_fc_ref, b_fc_ref,
               out_ref):
        Bt, S, H = x_ref.shape
        N = Bt * S                      # all rows of the batch tile -> matmul M dimension
        C = 2 * H                       # NCACell hidden channels (hidden_dim * 2)

        x = x_ref[...].reshape(N, H)    # leading-dim merge only (layout free)

        # ---- NCA perception: Conv1d(H, 2H, k=3, pad=1) -> ReLU -> Conv1d(2H, H, k=1)
        # Three conv taps fused into one wide matmul x @ [W_{t-1} | W_t | W_{t+1}]
        # (single MXU weight push).  The +-1 shifts with zero padding and per-sequence
        # boundaries are then exact (N,N) 0/1 shift-matrix matmuls.
        # (For long sequences this O(N^2) shift would be replaced by pltpu.roll + mask.)
        taps = jnp.dot(x, w_taps_ref[...], preferred_element_type=jnp.float32)    # (N, 3C)
        t_prev, t_mid, t_next = taps[:, :C], taps[:, C:2 * C], taps[:, 2 * C:]

        ii = lax.broadcasted_iota(jnp.int32, (N, N), 0)
        jj = lax.broadcasted_iota(jnp.int32, (N, N), 1)
        si = ii % S                                                    # position inside its own sequence
        sh_prev = ((ii - jj == 1) & (si != 0)).astype(jnp.float32)     # picks row t-1, zero at t == 0
        sh_next = ((jj - ii == 1) & (si != S - 1)).astype(jnp.float32) # picks row t+1, zero at t == S-1

        h1 = (jnp.dot(sh_prev, t_prev, preferred_element_type=jnp.float32)
              + t_mid
              + jnp.dot(sh_next, t_next, preferred_element_type=jnp.float32)
              + bc1_ref[...])
        h1 = jnp.maximum(h1, 0.0)
        dx = jnp.dot(h1, wc2_ref[...], preferred_element_type=jnp.float32) + bc2_ref[...]

        # ---- NCA update MLP: Linear(H, 2H) -> ReLU -> Linear(2H, H) -> Tanh
        u1 = jnp.maximum(
            jnp.dot(dx, wu1_ref[...], preferred_element_type=jnp.float32) + bu1_ref[...], 0.0)
        dx = jnp.tanh(
            jnp.dot(u1, wu2_ref[...], preferred_element_type=jnp.float32) + bu2_ref[...])

        # ---- stochastic cell update: keep cells where rand < sigmoid(update_rate)
        keep = u_ref[...].reshape(N, H) < prob_ref[...]     # (N,H) < (1,1) broadcast compare
        x_new = jnp.where(keep, x + dx, x)

        # ---- fused QKV projection (1/sqrt(head_dim) pre-folded into the Q columns)
        qkv = jnp.dot(x_new, w_qkv_ref[...], preferred_element_type=jnp.float32) + b_qkv_ref[...]
        q, k, v = qkv[:, :H], qkv[:, H:2 * H], qkv[:, 2 * H:]

        # ---- multi-head self-attention, batched over the whole batch tile per head.
        # Per-head output projection folded into row-slices of w_fc -> contexts are
        # accumulated directly, no lane concatenation of head_dim-wide chunks.
        # NOTE: on v6e/v7x, casting activations/weights to bf16 (keeping f32 accumulation)
        # would engage the fast MXU path; f32 kept here for exact parity with PyTorch.
        # TODO(synk): attention dropout (p=0.1) omitted -- exact identity in eval mode.
        w_fc = w_fc_ref[...]
        out = jnp.zeros((N, H), jnp.float32)
        for h in range(n_heads):
            lo = h * head_dim
            qh = q[:, lo:lo + head_dim].reshape(Bt, S, head_dim)
            kh = k[:, lo:lo + head_dim].reshape(Bt, S, head_dim)
            vh = v[:, lo:lo + head_dim].reshape(Bt, S, head_dim)
            s = jnp.einsum('bqd,bkd->bqk', qh, kh, preferred_element_type=jnp.float32)
            s = s - jnp.max(s, axis=-1, keepdims=True)
            p = jnp.exp(s)
            # reciprocal-multiply instead of an (S,S) divide
            p = p * (1.0 / jnp.sum(p, axis=-1, keepdims=True))
            ctx = jnp.einsum('bqk,bkd->bqd', p, vh, preferred_element_type=jnp.float32)
            out = out + jnp.dot(ctx.reshape(N, head_dim), w_fc[lo:lo + head_dim, :],
                                preferred_element_type=jnp.float32)

        out_ref[...] = (out + b_fc_ref[...]).reshape(Bt, S, H)

    return kernel


def nca_self_attention(x, params, n_heads, *, rng_key, batch_tile=None):
    B, S, H = x.shape
    assert H % n_heads == 0, "hidden_dim must be divisible by n_heads"
    head_dim = H // n_heads
    scale = math.sqrt(head_dim)
    if batch_tile is None:
        batch_tile = B              # at these sizes: batch everything into one wide tile
    assert B % batch_tile == 0

    # Host-side parameter packing (one-time layout plumbing):
    #  * three conv taps fused into one (H, 3*2H) matrix,
    #  * Q/K/V fused into one (H, 3H) matrix, 1/sqrt(head_dim) folded into Q.
    w_taps = jnp.concatenate(
        [params["w_conv1_t0"], params["w_conv1_t1"], params["w_conv1_t2"]], axis=1)
    w_qkv = jnp.concatenate([params["w_q"] / scale, params["w_k"], params["w_v"]], axis=1)
    b_qkv = jnp.concatenate([params["b_q"] / scale, params["b_k"], params["b_v"]], axis=1)

    prob = jax.nn.sigmoid(params["update_rate"]).reshape(1, 1).astype(jnp.float32)
    # TODO(synk): stochastic-update randomness drawn host-side (distributionally equal to
    # torch.rand_like, not bit-identical); an in-kernel pltpu.prng_* variant would fuse it fully.
    uniforms = jax.random.uniform(rng_key, (B, S, H), dtype=jnp.float32)

    weights = [
        w_taps, params["b_conv1"], params["w_conv2"], params["b_conv2"],
        params["w_up1"], params["b_up1"], params["w_up2"], params["b_up2"],
        w_qkv, b_qkv, params["w_fc"], params["b_fc"],
    ]

    def tile_spec():
        return pl.BlockSpec((batch_tile, S, H), lambda i: (i, 0, 0))

    def full_spec(a):
        nd = a.ndim
        return pl.BlockSpec(a.shape, lambda i, _nd=nd: (0,) * _nd)

    in_specs = ([tile_spec(), tile_spec(), full_spec(prob)]
                + [full_spec(w) for w in weights])

    kernel = make_nca_attention_kernel(n_heads, head_dim)
    return pl.pallas_call(
        kernel,
        out_shape=jax.ShapeDtypeStruct((B, S, H), jnp.float32),
        grid_spec=pltpu.PrefetchScalarGridSpec(
            num_scalar_prefetch=0,
            grid=(B // batch_tile,),
            in_specs=in_specs,
            out_specs=tile_spec(),
        ),
        # Batch tiles are independent -> "parallel" lets Mosaic shard the axis across
        # both TensorCores on v7x (harmless no-op on single-TC v5e/v6e).
        compiler_params=pltpu.CompilerParams(
            dimension_semantics=("parallel",)),
    )(x, uniforms, prob, *weights)


def init_params(key, hidden_dim):
    """Deterministic synthetic parameter init (shapes from NCASelfAttention.__init__)."""
    H = hidden_dim
    Hh = 2 * H  # NCACell hidden_dim = hidden_dim * 2
    ks = jax.random.split(key, 19)

    def w(k, shape, s=0.1):
        return jax.random.normal(k, shape, dtype=jnp.float32) * s

    return {
        # Conv1d(H, 2H, k=3): per-tap (in, out) matrices == weight[:, :, tap].T
        "w_conv1_t0": w(ks[0], (H, Hh)),
        "w_conv1_t1": w(ks[1], (H, Hh)),
        "w_conv1_t2": w(ks[2], (H, Hh)),
        "b_conv1": w(ks[3], (1, Hh)),
        # Conv1d(2H, H, k=1)
        "w_conv2": w(ks[4], (Hh, H)),
        "b_conv2": w(ks[5], (1, H)),
        # update MLP: Linear(H, 2H), Linear(2H, H)
        "w_up1": w(ks[6], (H, Hh)),
        "b_up1": w(ks[7], (1, Hh)),
        "w_up2": w(ks[8], (Hh, H)),
        "b_up2": w(ks[9], (1, H)),
        # attention projections
        "w_q": w(ks[10], (H, H)), "b_q": w(ks[11], (1, H)),
        "w_k": w(ks[12], (H, H)), "b_k": w(ks[13], (1, H)),
        "w_v": w(ks[14], (H, H)), "b_v": w(ks[15], (1, H)),
        "w_fc": w(ks[16], (H, H)), "b_fc": w(ks[17], (1, H)),
        # nn.Parameter(torch.ones(1) * 0.5)
        "update_rate": jnp.array([0.5], dtype=jnp.float32),
    }


if __name__ == "__main__":
    B, S, H, n_heads = 2, 8, 32, 4
    key = jax.random.PRNGKey(0)
    k_x, k_p, k_m = jax.random.split(key, 3)
    x = jax.random.normal(k_x, (B, S, H), dtype=jnp.float32)
    params = init_params(k_p, H)

    out = nca_self_attention(x, params, n_heads, rng_key=k_m)
    out = jax.block_until_ready(out)
    assert out.shape == (B, S, H) and out.dtype == jnp.float32
    assert bool(jnp.all(jnp.isfinite(out)))
    print("KERNEL_OK")
</pallas_src>

<mosaic_0001>
module attributes {stable_mosaic.version = 11 : i64} {
  func.func @kernel(%arg0: i32, %arg1: memref<2x8x32xf32, #tpu.memory_space<vmem>>, %arg2: memref<2x8x32xf32, #tpu.memory_space<vmem>>, %arg3: memref<1x1xf32, #tpu.memory_space<vmem>>, %arg4: memref<32x192xf32, #tpu.memory_space<vmem>>, %arg5: memref<1x64xf32, #tpu.memory_space<vmem>>, %arg6: memref<64x32xf32, #tpu.memory_space<vmem>>, %arg7: memref<1x32xf32, #tpu.memory_space<vmem>>, %arg8: memref<32x64xf32, #tpu.memory_space<vmem>>, %arg9: memref<1x64xf32, #tpu.memory_space<vmem>>, %arg10: memref<64x32xf32, #tpu.memory_space<vmem>>, %arg11: memref<1x32xf32, #tpu.memory_space<vmem>>, %arg12: memref<32x96xf32, #tpu.memory_space<vmem>>, %arg13: memref<1x96xf32, #tpu.memory_space<vmem>>, %arg14: memref<32x32xf32, #tpu.memory_space<vmem>>, %arg15: memref<1x32xf32, #tpu.memory_space<vmem>>, %arg16: memref<2x8x32xf32, #tpu.memory_space<vmem>>) attributes {dimension_semantics = [#tpu.dimension_semantics<parallel>], iteration_bounds = array<i64: 1>, scalar_prefetch = 0 : i64, scratch_operands = 0 : i64, tpu.core_type = #tpu.core_type<tc>, window_params = [{transform_indices = @transform_0, window_bounds = array<i64: 2, 8, 32>}, {transform_indices = @transform_1, window_bounds = array<i64: 2, 8, 32>}, {pipeline_mode = #tpu.pipeline_mode<synchronous>, transform_indices = @transform_2, window_bounds = array<i64: 1, 1>}, {pipeline_mode = #tpu.pipeline_mode<synchronous>, transform_indices = @transform_3, window_bounds = array<i64: 32, 192>}, {pipeline_mode = #tpu.pipeline_mode<synchronous>, transform_indices = @transform_4, window_bounds = array<i64: 1, 64>}, {pipeline_mode = #tpu.pipeline_mode<synchronous>, transform_indices = @transform_5, window_bounds = array<i64: 64, 32>}, {pipeline_mode = #tpu.pipeline_mode<synchronous>, transform_indices = @transform_6, window_bounds = array<i64: 1, 32>}, {pipeline_mode = #tpu.pipeline_mode<synchronous>, transform_indices = @transform_7, window_bounds = array<i64: 32, 64>}, {pipeline_mode = #tpu.pipeline_mode<synchronous>, transform_indices = @transform_8, window_bounds = array<i64: 1, 64>}, {pipeline_mode = #tpu.pipeline_mode<synchronous>, transform_indices = @transform_9, window_bounds = array<i64: 64, 32>}, {pipeline_mode = #tpu.pipeline_mode<synchronous>, transform_indices = @transform_10, window_bounds = array<i64: 1, 32>}, {pipeline_mode = #tpu.pipeline_mode<synchronous>, transform_indices = @transform_11, window_bounds = array<i64: 32, 96>}, {pipeline_mode = #tpu.pipeline_mode<synchronous>, transform_indices = @transform_12, window_bounds = array<i64: 1, 96>}, {pipeline_mode = #tpu.pipeline_mode<synchronous>, transform_indices = @transform_13, window_bounds = array<i64: 32, 32>}, {pipeline_mode = #tpu.pipeline_mode<synchronous>, transform_indices = @transform_14, window_bounds = array<i64: 1, 32>}, {transform_indices = @transform_15, window_bounds = array<i64: 2, 8, 32>}]} {
    %c0 = arith.constant 0 : index
    %c0_0 = arith.constant 0 : index
    %c0_1 = arith.constant 0 : index
    %0 = vector.load %arg1[%c0, %c0_0, %c0_1] : memref<2x8x32xf32, #tpu.memory_space<vmem>>, vector<2x8x32xf32>
    %1 = vector.shape_cast %0 : vector<2x8x32xf32> to vector<16x32xf32>
    %c0_2 = arith.constant 0 : index
    %c0_3 = arith.constant 0 : index
    %2 = vector.load %arg4[%c0_2, %c0_3] : memref<32x192xf32, #tpu.memory_space<vmem>>, vector<32x192xf32>
    %cst = arith.constant dense<0.000000e+00> : vector<16x192xf32>
    %3 = tpu.matmul %1, %2, %cst {dimension_numbers = #tpu.dot_dimension_numbers<[1], [0], [0], [1], [0, 0, 1, 1], [], []>} : vector<16x32xf32>, vector<32x192xf32>, vector<16x192xf32> -> vector<16x192xf32>
    %4 = vector.extract_strided_slice %3 {offsets = [0, 0], sizes = [16, 64], strides = [1, 1]} : vector<16x192xf32> to vector<16x64xf32>
    %5 = vector.extract_strided_slice %3 {offsets = [0, 64], sizes = [16, 64], strides = [1, 1]} : vector<16x192xf32> to vector<16x64xf32>
    %6 = vector.extract_strided_slice %3 {offsets = [0, 128], sizes = [16, 64], strides = [1, 1]} : vector<16x192xf32> to vector<16x64xf32>
    %7 = tpu.iota {dimensions = array<i32: 0>} : vector<16x16xi32>
    %8 = tpu.iota {dimensions = array<i32: 1>} : vector<16x16xi32>
    %c8_i32 = arith.constant 8 : i32
    %c0_i32 = arith.constant 0 : i32
    %9 = arith.cmpi eq, %c8_i32, %c0_i32 : i32
    %c1_i32 = arith.constant 1 : i32
    %10 = arith.select %9, %c1_i32, %c8_i32 : i32
    %11 = vector.broadcast %10 : i32 to vector<16x16xi32>
    %12 = arith.remsi %7, %11 : vector<16x16xi32>
    %c0_i32_4 = arith.constant 0 : i32
    %13 = vector.broadcast %c0_i32_4 : i32 to vector<16x16xi32>
    %14 = arith.cmpi ne, %12, %13 : vector<16x16xi32>
    %c0_i32_5 = arith.constant 0 : i32
    %15 = vector.broadcast %c0_i32_5 : i32 to vector<16x16xi32>
    %16 = arith.cmpi slt, %12, %15 : vector<16x16xi32>
    %c0_i32_6 = arith.constant 0 : i32
    %17 = arith.cmpi slt, %10, %c0_i32_6 : i32
    %18 = vector.broadcast %17 : i1 to vector<16x16xi1>
    %19 = vector.broadcast %18 : vector<16x16xi1> to vector<16x16xi1>
    %20 = arith.xori %16, %19 : vector<16x16xi1>
    %21 = arith.andi %20, %14 : vector<16x16xi1>
    %22 = vector.broadcast %10 : i32 to vector<16x16xi32>
    %23 = arith.addi %12, %22 : vector<16x16xi32>
    %24 = arith.select %21, %23, %12 : vector<16x16xi1>, vector<16x16xi32>
    %25 = arith.subi %7, %8 : vector<16x16xi32>
    %c1_i32_7 = arith.constant 1 : i32
    %26 = vector.broadcast %c1_i32_7 : i32 to vector<16x16xi32>
    %27 = arith.cmpi eq, %25, %26 : vector<16x16xi32>
    %c0_i32_8 = arith.constant 0 : i32
    %28 = vector.broadcast %c0_i32_8 : i32 to vector<16x16xi32>
    %29 = arith.cmpi ne, %24, %28 : vector<16x16xi32>
    %30 = arith.andi %27, %29 : vector<16x16xi1>
    %31 = arith.extui %30 : vector<16x16xi1> to vector<16x16xi32>
    %32 = arith.sitofp %31 : vector<16x16xi32> to vector<16x16xf32>
    %33 = arith.subi %8, %7 : vector<16x16xi32>
    %c1_i32_9 = arith.constant 1 : i32
    %34 = vector.broadcast %c1_i32_9 : i32 to vector<16x16xi32>
    %35 = arith.cmpi eq, %33, %34 : vector<16x16xi32>
    %c7_i32 = arith.constant 7 : i32
    %36 = vector.broadcast %c7_i32 : i32 to vector<16x16xi32>
    %37 = arith.cmpi ne, %24, %36 : vector<16x16xi32>
    %38 = arith.andi %35, %37 : vector<16x16xi1>
    %39 = arith.extui %38 : vector<16x16xi1> to vector<16x16xi32>
    %40 = arith.sitofp %39 : vector<16x16xi32> to vector<16x16xf32>
    %cst_10 = arith.constant dense<0.000000e+00> : vector<16x64xf32>
    %41 = tpu.matmul %32, %4, %cst_10 {dimension_numbers = #tpu.dot_dimension_numbers<[1], [0], [0], [1], [0, 0, 1, 1], [], []>} : vector<16x16xf32>, vector<16x64xf32>, vector<16x64xf32> -> vector<16x64xf32>
    %42 = arith.addf %41, %5 : vector<16x64xf32>
    %cst_11 = arith.constant dense<0.000000e+00> : vector<16x64xf32>
    %43 = tpu.matmul %40, %6, %cst_11 {dimension_numbers = #tpu.dot_dimension_numbers<[1], [0], [0], [1], [0, 0, 1, 1], [], []>} : vector<16x16xf32>, vector<16x64xf32>, vector<16x64xf32> -> vector<16x64xf32>
    %44 = arith.addf %42, %43 : vector<16x64xf32>
    %c0_12 = arith.constant 0 : index
    %c0_13 = arith.constant 0 : index
    %45 = vector.load %arg5[%c0_12, %c0_13] : memref<1x64xf32, #tpu.memory_space<vmem>>, vector<1x64xf32>
    %46 = vector.broadcast %45 : vector<1x64xf32> to vector<16x64xf32>
    %47 = arith.addf %44, %46 : vector<16x64xf32>
    %cst_14 = arith.constant 0.000000e+00 : f32
    %48 = vector.broadcast %cst_14 : f32 to vector<16x64xf32>
    %49 = arith.maximumf %47, %48 : vector<16x64xf32>
    %c0_15 = arith.constant 0 : index
    %c0_16 = arith.constant 0 : index
    %50 = vector.load %arg6[%c0_15, %c0_16] : memref<64x32xf32, #tpu.memory_space<vmem>>, vector<64x32xf32>
    %cst_17 = arith.constant dense<0.000000e+00> : vector<16x32xf32>
    %51 = tpu.matmul %49, %50, %cst_17 {dimension_numbers = #tpu.dot_dimension_numbers<[1], [0], [0], [1], [0, 0, 1, 1], [], []>} : vector<16x64xf32>, vector<64x32xf32>, vector<16x32xf32> -> vector<16x32xf32>
    %c0_18 = arith.constant 0 : index
    %c0_19 = arith.constant 0 : index
    %52 = vector.load %arg7[%c0_18, %c0_19] : memref<1x32xf32, #tpu.memory_space<vmem>>, vector<1x32xf32>
    %53 = vector.broadcast %52 : vector<1x32xf32> to vector<16x32xf32>
    %54 = arith.addf %51, %53 : vector<16x32xf32>
    %c0_20 = arith.constant 0 : index
    %c0_21 = arith.constant 0 : index
    %55 = vector.load %arg8[%c0_20, %c0_21] : memref<32x64xf32, #tpu.memory_space<vmem>>, vector<32x64xf32>
    %cst_22 = arith.constant dense<0.000000e+00> : vector<16x64xf32>
    %56 = tpu.matmul %54, %55, %cst_22 {dimension_numbers = #tpu.dot_dimension_numbers<[1], [0], [0], [1], [0, 0, 1, 1], [], []>} : vector<16x32xf32>, vector<32x64xf32>, vector<16x64xf32> -> vector<16x64xf32>
    %c0_23 = arith.constant 0 : index
    %c0_24 = arith.constant 0 : index
    %57 = vector.load %arg9[%c0_23, %c0_24] : memref<1x64xf32, #tpu.memory_space<vmem>>, vector<1x64xf32>
    %58 = vector.broadcast %57 : vector<1x64xf32> to vector<16x64xf32>
    %59 = arith.addf %56, %58 : vector<16x64xf32>
    %cst_25 = arith.constant 0.000000e+00 : f32
    %60 = vector.broadcast %cst_25 : f32 to vector<16x64xf32>
    %61 = arith.maximumf %59, %60 : vector<16x64xf32>
    %c0_26 = arith.constant 0 : index
    %c0_27 = arith.constant 0 : index
    %62 = vector.load %arg10[%c0_26, %c0_27] : memref<64x32xf32, #tpu.memory_space<vmem>>, vector<64x32xf32>
    %cst_28 = arith.constant dense<0.000000e+00> : vector<16x32xf32>
    %63 = tpu.matmul %61, %62, %cst_28 {dimension_numbers = #tpu.dot_dimension_numbers<[1], [0], [0], [1], [0, 0, 1, 1], [], []>} : vector<16x64xf32>, vector<64x32xf32>, vector<16x32xf32> -> vector<16x32xf32>
    %c0_29 = arith.constant 0 : index
    %c0_30 = arith.constant 0 : index
    %64 = vector.load %arg11[%c0_29, %c0_30] : memref<1x32xf32, #tpu.memory_space<vmem>>, vector<1x32xf32>
    %65 = vector.broadcast %64 : vector<1x32xf32> to vector<16x32xf32>
    %66 = arith.addf %63, %65 : vector<16x32xf32>
    %67 = math.tanh %66 : vector<16x32xf32>
    %c0_31 = arith.constant 0 : index
    %c0_32 = arith.constant 0 : index
    %c0_33 = arith.constant 0 : index
    %68 = vector.load %arg2[%c0_31, %c0_32, %c0_33] : memref<2x8x32xf32, #tpu.memory_space<vmem>>, vector<2x8x32xf32>
    %69 = vector.shape_cast %68 : vector<2x8x32xf32> to vector<16x32xf32>
    %c0_34 = arith.constant 0 : index
    %c0_35 = arith.constant 0 : index
    %70 = vector.load %arg3[%c0_34, %c0_35] : memref<1x1xf32, #tpu.memory_space<vmem>>, vector<1x1xf32>
    %71 = vector.broadcast %70 : vector<1x1xf32> to vector<16x32xf32>
    %72 = arith.cmpf olt, %69, %71 : vector<16x32xf32>
    %73 = arith.addf %1, %67 : vector<16x32xf32>
    %74 = arith.select %72, %73, %1 : vector<16x32xi1>, vector<16x32xf32>
    %c0_36 = arith.constant 0 : index
    %c0_37 = arith.constant 0 : index
    %75 = vector.load %arg12[%c0_36, %c0_37] : memref<32x96xf32, #tpu.memory_space<vmem>>, vector<32x96xf32>
    %cst_38 = arith.constant dense<0.000000e+00> : vector<16x96xf32>
    %76 = tpu.matmul %74, %75, %cst_38 {dimension_numbers = #tpu.dot_dimension_numbers<[1], [0], [0], [1], [0, 0, 1, 1], [], []>} : vector<16x32xf32>, vector<32x96xf32>, vector<16x96xf32> -> vector<16x96xf32>
    %c0_39 = arith.constant 0 : index
    %c0_40 = arith.constant 0 : index
    %77 = vector.load %arg13[%c0_39, %c0_40] : memref<1x96xf32, #tpu.memory_space<vmem>>, vector<1x96xf32>
    %78 = vector.broadcast %77 : vector<1x96xf32> to vector<16x96xf32>
    %79 = arith.addf %76, %78 : vector<16x96xf32>
    %80 = vector.extract_strided_slice %79 {offsets = [0, 0], sizes = [16, 32], strides = [1, 1]} : vector<16x96xf32> to vector<16x32xf32>
    %81 = vector.extract_strided_slice %79 {offsets = [0, 32], sizes = [16, 32], strides = [1, 1]} : vector<16x96xf32> to vector<16x32xf32>
    %82 = vector.extract_strided_slice %79 {offsets = [0, 64], sizes = [16, 32], strides = [1, 1]} : vector<16x96xf32> to vector<16x32xf32>
    %c0_41 = arith.constant 0 : index
    %c0_42 = arith.constant 0 : index
    %83 = vector.load %arg14[%c0_41, %c0_42] : memref<32x32xf32, #tpu.memory_space<vmem>>, vector<32x32xf32>
    %cst_43 = arith.constant 0.000000e+00 : f32
    %84 = vector.broadcast %cst_43 : f32 to vector<16x32xf32>
    %85 = vector.extract_strided_slice %80 {offsets = [0, 0], sizes = [16, 8], strides = [1, 1]} : vector<16x32xf32> to vector<16x8xf32>
    %86 = vector.shape_cast %85 : vector<16x8xf32> to vector<2x8x8xf32>
    %87 = vector.extract_strided_slice %81 {offsets = [0, 0], sizes = [16, 8], strides = [1, 1]} : vector<16x32xf32> to vector<16x8xf32>
    %88 = vector.shape_cast %87 : vector<16x8xf32> to vector<2x8x8xf32>
    %89 = vector.extract_strided_slice %82 {offsets = [0, 0], sizes = [16, 8], strides = [1, 1]} : vector<16x32xf32> to vector<16x8xf32>
    %90 = vector.shape_cast %89 : vector<16x8xf32> to vector<2x8x8xf32>
    "tpu.trace_start"() <{level = 10 : i32, message = "bqd,bkd->bqk"}> : () -> ()
    %cst_44 = arith.constant dense<0.000000e+00> : vector<2x8x8xf32>
    %91 = tpu.matmul %86, %88, %cst_44 {dimension_numbers = #tpu.dot_dimension_numbers<[2], [2], [1], [1], [0, 0, 0, 1, 1, 1], [0], [0]>} : vector<2x8x8xf32>, vector<2x8x8xf32>, vector<2x8x8xf32> -> vector<2x8x8xf32>
    "tpu.trace_stop"() : () -> ()
    %cst_45 = arith.constant dense<0xFF800000> : vector<2x8xf32>
    %92 = vector.multi_reduction <maximumf>, %91, %cst_45 [2] : vector<2x8x8xf32> to vector<2x8xf32>
    %93 = vector.shape_cast %92 : vector<2x8xf32> to vector<2x8x1xf32>
    %94 = vector.broadcast %93 : vector<2x8x1xf32> to vector<2x8x8xf32>
    %95 = arith.subf %91, %94 : vector<2x8x8xf32>
    %96 = math.exp %95 : vector<2x8x8xf32>
    %cst_46 = arith.constant dense<0.000000e+00> : vector<2x8xf32>
    %97 = vector.multi_reduction <add>, %96, %cst_46 [2] : vector<2x8x8xf32> to vector<2x8xf32>
    %98 = vector.shape_cast %97 : vector<2x8xf32> to vector<2x8x1xf32>
    %cst_47 = arith.constant 1.000000e+00 : f32
    %99 = vector.broadcast %cst_47 : f32 to vector<2x8x1xf32>
    %100 = arith.divf %99, %98 : vector<2x8x1xf32>
    %101 = vector.broadcast %100 : vector<2x8x1xf32> to vector<2x8x8xf32>
    %102 = arith.mulf %96, %101 : vector<2x8x8xf32>
    "tpu.trace_start"() <{level = 10 : i32, message = "bqk,bkd->bqd"}> : () -> ()
    %cst_48 = arith.constant dense<0.000000e+00> : vector<2x8x8xf32>
    %103 = tpu.matmul %102, %90, %cst_48 {dimension_numbers = #tpu.dot_dimension_numbers<[2], [1], [1], [2], [0, 0, 0, 1, 1, 2], [0], [0]>} : vector<2x8x8xf32>, vector<2x8x8xf32>, vector<2x8x8xf32> -> vector<2x8x8xf32>
    "tpu.trace_stop"() : () -> ()
    %104 = vector.shape_cast %103 : vector<2x8x8xf32> to vector<16x8xf32>
    %105 = vector.extract_strided_slice %83 {offsets = [0, 0], sizes = [8, 32], strides = [1, 1]} : vector<32x32xf32> to vector<8x32xf32>
    %cst_49 = arith.constant dense<0.000000e+00> : vector<16x32xf32>
    %106 = tpu.matmul %104, %105, %cst_49 {dimension_numbers = #tpu.dot_dimension_numbers<[1], [0], [0], [1], [0, 0, 1, 1], [], []>} : vector<16x8xf32>, vector<8x32xf32>, vector<16x32xf32> -> vector<16x32xf32>
    %107 = arith.addf %84, %106 : vector<16x32xf32>
    %108 = vector.extract_strided_slice %80 {offsets = [0, 8], sizes = [16, 8], strides = [1, 1]} : vector<16x32xf32> to vector<16x8xf32>
    %109 = vector.shape_cast %108 : vector<16x8xf32> to vector<2x8x8xf32>
    %110 = vector.extract_strided_slice %81 {offsets = [0, 8], sizes = [16, 8], strides = [1, 1]} : vector<16x32xf32> to vector<16x8xf32>
    %111 = vector.shape_cast %110 : vector<16x8xf32> to vector<2x8x8xf32>
    %112 = vector.extract_strided_slice %82 {offsets = [0, 8], sizes = [16, 8], strides = [1, 1]} : vector<16x32xf32> to vector<16x8xf32>
    %113 = vector.shape_cast %112 : vector<16x8xf32> to vector<2x8x8xf32>
    "tpu.trace_start"() <{level = 10 : i32, message = "bqd,bkd->bqk"}> : () -> ()
    %cst_50 = arith.constant dense<0.000000e+00> : vector<2x8x8xf32>
    %114 = tpu.matmul %109, %111, %cst_50 {dimension_numbers = #tpu.dot_dimension_numbers<[2], [2], [1], [1], [0, 0, 0, 1, 1, 1], [0], [0]>} : vector<2x8x8xf32>, vector<2x8x8xf32>, vector<2x8x8xf32> -> vector<2x8x8xf32>
    "tpu.trace_stop"() : () -> ()
    %cst_51 = arith.constant dense<0xFF800000> : vector<2x8xf32>
    %115 = vector.multi_reduction <maximumf>, %114, %cst_51 [2] : vector<2x8x8xf32> to vector<2x8xf32>
    %116 = vector.shape_cast %115 : vector<2x8xf32> to vector<2x8x1xf32>
    %117 = vector.broadcast %116 : vector<2x8x1xf32> to vector<2x8x8xf32>
    %118 = arith.subf %114, %117 : vector<2x8x8xf32>
    %119 = math.exp %118 : vector<2x8x8xf32>
    %cst_52 = arith.constant dense<0.000000e+00> : vector<2x8xf32>
    %120 = vector.multi_reduction <add>, %119, %cst_52 [2] : vector<2x8x8xf32> to vector<2x8xf32>
    %121 = vector.shape_cast %120 : vector<2x8xf32> to vector<2x8x1xf32>
    %cst_53 = arith.constant 1.000000e+00 : f32
    %122 = vector.broadcast %cst_53 : f32 to vector<2x8x1xf32>
    %123 = arith.divf %122, %121 : vector<2x8x1xf32>
    %124 = vector.broadcast %123 : vector<2x8x1xf32> to vector<2x8x8xf32>
    %125 = arith.mulf %119, %124 : vector<2x8x8xf32>
    "tpu.trace_start"() <{level = 10 : i32, message = "bqk,bkd->bqd"}> : () -> ()
    %cst_54 = arith.constant dense<0.000000e+00> : vector<2x8x8xf32>
    %126 = tpu.matmul %125, %113, %cst_54 {dimension_numbers = #tpu.dot_dimension_numbers<[2], [1], [1], [2], [0, 0, 0, 1, 1, 2], [0], [0]>} : vector<2x8x8xf32>, vector<2x8x8xf32>, vector<2x8x8xf32> -> vector<2x8x8xf32>
    "tpu.trace_stop"() : () -> ()
    %127 = vector.shape_cast %126 : vector<2x8x8xf32> to vector<16x8xf32>
    %128 = vector.extract_strided_slice %83 {offsets = [8, 0], sizes = [8, 32], strides = [1, 1]} : vector<32x32xf32> to vector<8x32xf32>
    %cst_55 = arith.constant dense<0.000000e+00> : vector<16x32xf32>
    %129 = tpu.matmul %127, %128, %cst_55 {dimension_numbers = #tpu.dot_dimension_numbers<[1], [0], [0], [1], [0, 0, 1, 1], [], []>} : vector<16x8xf32>, vector<8x32xf32>, vector<16x32xf32> -> vector<16x32xf32>
    %130 = arith.addf %107, %129 : vector<16x32xf32>
    %131 = vector.extract_strided_slice %80 {offsets = [0, 16], sizes = [16, 8], strides = [1, 1]} : vector<16x32xf32> to vector<16x8xf32>
    %132 = vector.shape_cast %131 : vector<16x8xf32> to vector<2x8x8xf32>
    %133 = vector.extract_strided_slice %81 {offsets = [0, 16], sizes = [16, 8], strides = [1, 1]} : vector<16x32xf32> to vector<16x8xf32>
    %134 = vector.shape_cast %133 : vector<16x8xf32> to vector<2x8x8xf32>
    %135 = vector.extract_strided_slice %82 {offsets = [0, 16], sizes = [16, 8], strides = [1, 1]} : vector<16x32xf32> to vector<16x8xf32>
    %136 = vector.shape_cast %135 : vector<16x8xf32> to vector<2x8x8xf32>
    "tpu.trace_start"() <{level = 10 : i32, message = "bqd,bkd->bqk"}> : () -> ()
    %cst_56 = arith.constant dense<0.000000e+00> : vector<2x8x8xf32>
    %137 = tpu.matmul %132, %134, %cst_56 {dimension_numbers = #tpu.dot_dimension_numbers<[2], [2], [1], [1], [0, 0, 0, 1, 1, 1], [0], [0]>} : vector<2x8x8xf32>, vector<2x8x8xf32>, vector<2x8x8xf32> -> vector<2x8x8xf32>
    "tpu.trace_stop"() : () -> ()
    %cst_57 = arith.constant dense<0xFF800000> : vector<2x8xf32>
    %138 = vector.multi_reduction <maximumf>, %137, %cst_57 [2] : vector<2x8x8xf32> to vector<2x8xf32>
    %139 = vector.shape_cast %138 : vector<2x8xf32> to vector<2x8x1xf32>
    %140 = vector.broadcast %139 : vector<2x8x1xf32> to vector<2x8x8xf32>
    %141 = arith.subf %137, %140 : vector<2x8x8xf32>
    %142 = math.exp %141 : vector<2x8x8xf32>
    %cst_58 = arith.constant dense<0.000000e+00> : vector<2x8xf32>
    %143 = vector.multi_reduction <add>, %142, %cst_58 [2] : vector<2x8x8xf32> to vector<2x8xf32>
    %144 = vector.shape_cast %143 : vector<2x8xf32> to vector<2x8x1xf32>
    %cst_59 = arith.constant 1.000000e+00 : f32
    %145 = vector.broadcast %cst_59 : f32 to vector<2x8x1xf32>
    %146 = arith.divf %145, %144 : vector<2x8x1xf32>
    %147 = vector.broadcast %146 : vector<2x8x1xf32> to vector<2x8x8xf32>
    %148 = arith.mulf %142, %147 : vector<2x8x8xf32>
    "tpu.trace_start"() <{level = 10 : i32, message = "bqk,bkd->bqd"}> : () -> ()
    %cst_60 = arith.constant dense<0.000000e+00> : vector<2x8x8xf32>
    %149 = tpu.matmul %148, %136, %cst_60 {dimension_numbers = #tpu.dot_dimension_numbers<[2], [1], [1], [2], [0, 0, 0, 1, 1, 2], [0], [0]>} : vector<2x8x8xf32>, vector<2x8x8xf32>, vector<2x8x8xf32> -> vector<2x8x8xf32>
    "tpu.trace_stop"() : () -> ()
    %150 = vector.shape_cast %149 : vector<2x8x8xf32> to vector<16x8xf32>
    %151 = vector.extract_strided_slice %83 {offsets = [16, 0], sizes = [8, 32], strides = [1, 1]} : vector<32x32xf32> to vector<8x32xf32>
    %cst_61 = arith.constant dense<0.000000e+00> : vector<16x32xf32>
    %152 = tpu.matmul %150, %151, %cst_61 {dimension_numbers = #tpu.dot_dimension_numbers<[1], [0], [0], [1], [0, 0, 1, 1], [], []>} : vector<16x8xf32>, vector<8x32xf32>, vector<16x32xf32> -> vector<16x32xf32>
    %153 = arith.addf %130, %152 : vector<16x32xf32>
    %154 = vector.extract_strided_slice %80 {offsets = [0, 24], sizes = [16, 8], strides = [1, 1]} : vector<16x32xf32> to vector<16x8xf32>
    %155 = vector.shape_cast %154 : vector<16x8xf32> to vector<2x8x8xf32>
    %156 = vector.extract_strided_slice %81 {offsets = [0, 24], sizes = [16, 8], strides = [1, 1]} : vector<16x32xf32> to vector<16x8xf32>
    %157 = vector.shape_cast %156 : vector<16x8xf32> to vector<2x8x8xf32>
    %158 = vector.extract_strided_slice %82 {offsets = [0, 24], sizes = [16, 8], strides = [1, 1]} : vector<16x32xf32> to vector<16x8xf32>
    %159 = vector.shape_cast %158 : vector<16x8xf32> to vector<2x8x8xf32>
    "tpu.trace_start"() <{level = 10 : i32, message = "bqd,bkd->bqk"}> : () -> ()
    %cst_62 = arith.constant dense<0.000000e+00> : vector<2x8x8xf32>
    %160 = tpu.matmul %155, %157, %cst_62 {dimension_numbers = #tpu.dot_dimension_numbers<[2], [2], [1], [1], [0, 0, 0, 1, 1, 1], [0], [0]>} : vector<2x8x8xf32>, vector<2x8x8xf32>, vector<2x8x8xf32> -> vector<2x8x8xf32>
    "tpu.trace_stop"() : () -> ()
    %cst_63 = arith.constant dense<0xFF800000> : vector<2x8xf32>
    %161 = vector.multi_reduction <maximumf>, %160, %cst_63 [2] : vector<2x8x8xf32> to vector<2x8xf32>
    %162 = vector.shape_cast %161 : vector<2x8xf32> to vector<2x8x1xf32>
    %163 = vector.broadcast %162 : vector<2x8x1xf32> to vector<2x8x8xf32>
    %164 = arith.subf %160, %163 : vector<2x8x8xf32>
    %165 = math.exp %164 : vector<2x8x8xf32>
    %cst_64 = arith.constant dense<0.000000e+00> : vector<2x8xf32>
    %166 = vector.multi_reduction <add>, %165, %cst_64 [2] : vector<2x8x8xf32> to vector<2x8xf32>
    %167 = vector.shape_cast %166 : vector<2x8xf32> to vector<2x8x1xf32>
    %cst_65 = arith.constant 1.000000e+00 : f32
    %168 = vector.broadcast %cst_65 : f32 to vector<2x8x1xf32>
    %169 = arith.divf %168, %167 : vector<2x8x1xf32>
    %170 = vector.broadcast %169 : vector<2x8x1xf32> to vector<2x8x8xf32>
    %171 = arith.mulf %165, %170 : vector<2x8x8xf32>
    "tpu.trace_start"() <{level = 10 : i32, message = "bqk,bkd->bqd"}> : () -> ()
    %cst_66 = arith.constant dense<0.000000e+00> : vector<2x8x8xf32>
    %172 = tpu.matmul %171, %159, %cst_66 {dimension_numbers = #tpu.dot_dimension_numbers<[2], [1], [1], [2], [0, 0, 0, 1, 1, 2], [0], [0]>} : vector<2x8x8xf32>, vector<2x8x8xf32>, vector<2x8x8xf32> -> vector<2x8x8xf32>
    "tpu.trace_stop"() : () -> ()
    %173 = vector.shape_cast %172 : vector<2x8x8xf32> to vector<16x8xf32>
    %174 = vector.extract_strided_slice %83 {offsets = [24, 0], sizes = [8, 32], strides = [1, 1]} : vector<32x32xf32> to vector<8x32xf32>
    %cst_67 = arith.constant dense<0.000000e+00> : vector<16x32xf32>
    %175 = tpu.matmul %173, %174, %cst_67 {dimension_numbers = #tpu.dot_dimension_numbers<[1], [0], [0], [1], [0, 0, 1, 1], [], []>} : vector<16x8xf32>, vector<8x32xf32>, vector<16x32xf32> -> vector<16x32xf32>
    %176 = arith.addf %153, %175 : vector<16x32xf32>
    %c0_68 = arith.constant 0 : index
    %c0_69 = arith.constant 0 : index
    %177 = vector.load %arg15[%c0_68, %c0_69] : memref<1x32xf32, #tpu.memory_space<vmem>>, vector<1x32xf32>
    %178 = vector.broadcast %177 : vector<1x32xf32> to vector<16x32xf32>
    %179 = arith.addf %176, %178 : vector<16x32xf32>
    %180 = vector.shape_cast %179 : vector<16x32xf32> to vector<2x8x32xf32>
    %c0_70 = arith.constant 0 : index
    %c0_71 = arith.constant 0 : index
    %c0_72 = arith.constant 0 : index
    %181 = vector.load %arg16[%c0_70, %c0_71, %c0_72] : memref<2x8x32xf32, #tpu.memory_space<vmem>>, vector<2x8x32xf32>
    tpu.vector_store %arg16[%c0_70, %c0_71, %c0_72], %180 {strides = array<i32>} : memref<2x8x32xf32, #tpu.memory_space<vmem>>, vector<2x8x32xf32>,
    return
  }
  func.func @transform_0(%arg0: i32) -> (i32, i32, i32) {
    %c0_i32 = arith.constant 0 : i32
    %c0_i32_0 = arith.constant 0 : i32
    %c0_i32_1 = arith.constant 0 : i32
    return %arg0, %c0_i32, %c0_i32_0 : i32, i32, i32
  }
  func.func @transform_1(%arg0: i32) -> (i32, i32, i32) {
    %c0_i32 = arith.constant 0 : i32
    %c0_i32_0 = arith.constant 0 : i32
    %c0_i32_1 = arith.constant 0 : i32
    return %arg0, %c0_i32, %c0_i32_0 : i32, i32, i32
  }
  func.func @transform_2(%arg0: i32) -> (i32, i32) {
    %c0_i32 = arith.constant 0 : i32
    %c0_i32_0 = arith.constant 0 : i32
    %c0_i32_1 = arith.constant 0 : i32
    return %c0_i32, %c0_i32_0 : i32, i32
  }
  func.func @transform_3(%arg0: i32) -> (i32, i32) {
    %c0_i32 = arith.constant 0 : i32
    %c0_i32_0 = arith.constant 0 : i32
    %c0_i32_1 = arith.constant 0 : i32
    return %c0_i32, %c0_i32_0 : i32, i32
  }
  func.func @transform_4(%arg0: i32) -> (i32, i32) {
    %c0_i32 = arith.constant 0 : i32
    %c0_i32_0 = arith.constant 0 : i32
    %c0_i32_1 = arith.constant 0 : i32
    return %c0_i32, %c0_i32_0 : i32, i32
  }
  func.func @transform_5(%arg0: i32) -> (i32, i32) {
    %c0_i32 = arith.constant 0 : i32
    %c0_i32_0 = arith.constant 0 : i32
    %c0_i32_1 = arith.constant 0 : i32
    return %c0_i32, %c0_i32_0 : i32, i32
  }
  func.func @transform_6(%arg0: i32) -> (i32, i32) {
    %c0_i32 = arith.constant 0 : i32
    %c0_i32_0 = arith.constant 0 : i32
    %c0_i32_1 = arith.constant 0 : i32
    return %c0_i32, %c0_i32_0 : i32, i32
  }
  func.func @transform_7(%arg0: i32) -> (i32, i32) {
    %c0_i32 = arith.constant 0 : i32
    %c0_i32_0 = arith.constant 0 : i32
    %c0_i32_1 = arith.constant 0 : i32
    return %c0_i32, %c0_i32_0 : i32, i32
  }
  func.func @transform_8(%arg0: i32) -> (i32, i32) {
    %c0_i32 = arith.constant 0 : i32
    %c0_i32_0 = arith.constant 0 : i32
    %c0_i32_1 = arith.constant 0 : i32
    return %c0_i32, %c0_i32_0 : i32, i32
  }
  func.func @transform_9(%arg0: i32) -> (i32, i32) {
    %c0_i32 = arith.constant 0 : i32
    %c0_i32_0 = arith.constant 0 : i32
    %c0_i32_1 = arith.constant 0 : i32
    return %c0_i32, %c0_i32_0 : i32, i32
  }
  func.func @transform_10(%arg0: i32) -> (i32, i32) {
    %c0_i32 = arith.constant 0 : i32
    %c0_i32_0 = arith.constant 0 : i32
    %c0_i32_1 = arith.constant 0 : i32
    return %c0_i32, %c0_i32_0 : i32, i32
  }
  func.func @transform_11(%arg0: i32) -> (i32, i32) {
    %c0_i32 = arith.constant 0 : i32
    %c0_i32_0 = arith.constant 0 : i32
    %c0_i32_1 = arith.constant 0 : i32
    return %c0_i32, %c0_i32_0 : i32, i32
  }
  func.func @transform_12(%arg0: i32) -> (i32, i32) {
    %c0_i32 = arith.constant 0 : i32
    %c0_i32_0 = arith.constant 0 : i32
    %c0_i32_1 = arith.constant 0 : i32
    return %c0_i32, %c0_i32_0 : i32, i32
  }
  func.func @transform_13(%arg0: i32) -> (i32, i32) {
    %c0_i32 = arith.constant 0 : i32
    %c0_i32_0 = arith.constant 0 : i32
    %c0_i32_1 = arith.constant 0 : i32
    return %c0_i32, %c0_i32_0 : i32, i32
  }
  func.func @transform_14(%arg0: i32) -> (i32, i32) {
    %c0_i32 = arith.constant 0 : i32
    %c0_i32_0 = arith.constant 0 : i32
    %c0_i32_1 = arith.constant 0 : i32
    return %c0_i32, %c0_i32_0 : i32, i32
  }
  func.func @transform_15(%arg0: i32) -> (i32, i32, i32) {
    %c0_i32 = arith.constant 0 : i32
    %c0_i32_0 = arith.constant 0 : i32
    %c0_i32_1 = arith.constant 0 : i32
    return %arg0, %c0_i32, %c0_i32_0 : i32, i32, i32
  }
}

</mosaic_0001>

<llo_original>
// kernel: tpu_custom_call.1
$region0: #{tpu_custom_call.1}
  #allocation0 [shape = 'u32[]', space=smem, size = 0x4, offset = 0x4, fixed_abs, tag = 'smem constant byte address 0x4 - core index']
  #allocation1 [shape = 'u32[144,128]{1,0:T(1,128)}', space=vmem, size = 0x12000, scoped, tag = 'internal scratch']
  #allocation2 [shape = 'f32[1,1]{1,0:T(1,128)S(1)}', space=vmem, size = 0x200, scoped, tag = 'scoped memory for tpu_custom_call.1']
  %s0 = inlined_call_operand.hbm [shape: f32[2,8,32], index: 0, kind: input, shape index: {}]
  %s1 = inlined_call_operand.hbm [shape: f32[2,8,32], index: 1, kind: input, shape index: {}]
  %s2 = inlined_call_operand.<no memory space> [shape: f32[1,1], index: 2, kind: input, shape index: {}]
  %s3 = inlined_call_operand.vmem [shape: f32[32,192], index: 3, kind: input, shape index: {}]
  %s4 = inlined_call_operand.vmem [shape: f32[1,64], index: 4, kind: input, shape index: {}]
  %s5 = inlined_call_operand.vmem [shape: f32[64,32], index: 5, kind: input, shape index: {}]
  %s6 = inlined_call_operand.vmem [shape: f32[1,32], index: 6, kind: input, shape index: {}]
  %s7 = inlined_call_operand.vmem [shape: f32[32,64], index: 7, kind: input, shape index: {}]
  %s8 = inlined_call_operand.vmem [shape: f32[1,64], index: 8, kind: input, shape index: {}]
  %s9 = inlined_call_operand.vmem [shape: f32[64,32], index: 9, kind: input, shape index: {}]
  %s10 = inlined_call_operand.vmem [shape: f32[1,32], index: 10, kind: input, shape index: {}]
  %s11 = inlined_call_operand.vmem [shape: f32[32,96], index: 11, kind: input, shape index: {}]
  %s12 = inlined_call_operand.vmem [shape: f32[1,96], index: 12, kind: input, shape index: {}]
  %s13 = inlined_call_operand.vmem [shape: f32[32,32], index: 13, kind: input, shape index: {}]
  %s14 = inlined_call_operand.vmem [shape: f32[1,32], index: 14, kind: input, shape index: {}]
  %s15 = inlined_call_operand.hbm [shape: f32[2,8,32], index: 15, kind: output, shape index: {}]
  %s16 = sld [smem:[#allocation0]]
  $region78: #{tpu_custom_call.1} parent=0
    _
  %s18 = ssub.s32 1, %s16
  %s19 = scalar_select 0, %s18, %s16
  %v20 = vstv %s2
  %21 = vst [vmem:[#allocation2] sm:$0x1] %v20
  $region1: #{tpu_custom_call.1} parent=0
    #allocation3 [shape = 'u8[8192]{0}', space=vmem, size = 0x2000, scoped, tag = 'input window, operand 0, single buffered']
    #allocation4 [shape = 's32[1]{0}', space=sflag, size = 0x4, scoped, tag = 'scoped memory for tpu_custom_call.1']
    #allocation5 [shape = 's32[1]{0}', space=sflag, size = 0x4, scoped, tag = 'scoped memory for tpu_custom_call.1']
    #allocation6 [shape = 'u8[8192]{0}', space=vmem, size = 0x2000, scoped, tag = 'input window, operand 1, single buffered']
    #allocation7 [shape = 's32[1]{0}', space=sflag, size = 0x4, scoped, tag = 'scoped memory for tpu_custom_call.1']
    #allocation8 [shape = 'u8[8192]{0}', space=vmem, size = 0x2000, scoped, tag = 'output window, operand 0, single buffered']
    %22 = vsyncpa [#allocation4], 0
    %23 = vsyncpa [#allocation7], 0
    %24 = vsyncpa [#allocation5], 0
    // Predicated region
    $region2: #{tpu_custom_call.1} parent=1 // pred_check
      _
    $region3: #{tpu_custom_call.1} parent=1 // pred_check_branch
      %26 = sbr.rel (0) target = $region5
    $region4: #{tpu_custom_call.1} parent=1 // pred_region
      %s28 = ssub.s32 256, 256
      %29 = vsyncadd [#allocation4], %s28
      %s30 = sshll.u32 [#allocation3], 4
      %s31 = int_to_ptr.vmem [resolvable:$true] %s30
      %36 = dma.hbm_to_vmem [thread:$0]  %s0, 256, %s31, [#allocation4], 128, 128, 8
    $region5: #{tpu_custom_call.1} parent=1 // pred_fallthru
      _
    // Predicated region
    $region6: #{tpu_custom_call.1} parent=1 // pred_check
      _
    $region7: #{tpu_custom_call.1} parent=1 // pred_check_branch
      %38 = sbr.rel (0) target = $region9
    $region8: #{tpu_custom_call.1} parent=1 // pred_region
      %s40 = ssub.s32 256, 256
      %41 = vsyncadd [#allocation7], %s40
      %s42 = sshll.u32 [#allocation6], 4
      %s43 = int_to_ptr.vmem [resolvable:$true] %s42
      %48 = dma.hbm_to_vmem [thread:$0]  %s1, 256, %s43, [#allocation7], 128, 128, 8
    $region9: #{tpu_custom_call.1} parent=1 // pred_fallthru
      _
    // Predicated region
    $region10: #{tpu_custom_call.1} parent=1 // pred_check
      _
    $region11: #{tpu_custom_call.1} parent=1 // pred_check_branch
      %50 = sbr.rel (0) target = $region13
    $region12: #{tpu_custom_call.1} parent=1 // pred_region
      _
    $region13: #{tpu_custom_call.1} parent=1 // pred_fallthru
      _
    // Predicated region
    $region14: #{tpu_custom_call.1} parent=1 // pred_check
      _
    $region15: #{tpu_custom_call.1} parent=1 // pred_check_branch
      %52 = sbr.rel (0) target = $region17
    $region16: #{tpu_custom_call.1} parent=1 // pred_region
      _
    $region17: #{tpu_custom_call.1} parent=1 // pred_fallthru
      _
    // Predicated region
    $region18: #{tpu_custom_call.1} parent=1 // pred_check
      _
    $region19: #{tpu_custom_call.1} parent=1 // pred_check_branch
      %54 = sbr.rel (0) target = $region21
    $region20: #{tpu_custom_call.1} parent=1 // pred_region
      _
    $region21: #{tpu_custom_call.1} parent=1 // pred_fallthru
      _
    // Predicated region
    $region22: #{tpu_custom_call.1} parent=1 // pred_check
      _
    $region23: #{tpu_custom_call.1} parent=1 // pred_check_branch
      %56 = sbr.rel (0) target = $region25
    $region24: #{tpu_custom_call.1} parent=1 // pred_region
      _
    $region25: #{tpu_custom_call.1} parent=1 // pred_fallthru
      _
    // Predicated region
    $region26: #{tpu_custom_call.1} parent=1 // pred_check
      _
    $region27: #{tpu_custom_call.1} parent=1 // pred_check_branch
      %58 = sbr.rel (0) target = $region29
    $region28: #{tpu_custom_call.1} parent=1 // pred_region
      _
    $region29: #{tpu_custom_call.1} parent=1 // pred_fallthru
      _
    // Predicated region
    $region30: #{tpu_custom_call.1} parent=1 // pred_check
      _
    $region31: #{tpu_custom_call.1} parent=1 // pred_check_branch
      %60 = sbr.rel (0) target = $region33
    $region32: #{tpu_custom_call.1} parent=1 // pred_region
      _
    $region33: #{tpu_custom_call.1} parent=1 // pred_fallthru
      _
    // Predicated region
    $region34: #{tpu_custom_call.1} parent=1 // pred_check
      _
    $region35: #{tpu_custom_call.1} parent=1 // pred_check_branch
      %62 = sbr.rel (0) target = $region37
    $region36: #{tpu_custom_call.1} parent=1 // pred_region
      _
    $region37: #{tpu_custom_call.1} parent=1 // pred_fallthru
      _
    // Predicated region
    $region38: #{tpu_custom_call.1} parent=1 // pred_check
      _
    $region39: #{tpu_custom_call.1} parent=1 // pred_check_branch
      %64 = sbr.rel (0) target = $region41
    $region40: #{tpu_custom_call.1} parent=1 // pred_region
      _
    $region41: #{tpu_custom_call.1} parent=1 // pred_fallthru
      _
    // Predicated region
    $region42: #{tpu_custom_call.1} parent=1 // pred_check
      _
    $region43: #{tpu_custom_call.1} parent=1 // pred_check_branch
      %66 = sbr.rel (0) target = $region45
    $region44: #{tpu_custom_call.1} parent=1 // pred_region
      _
    $region45: #{tpu_custom_call.1} parent=1 // pred_fallthru
      _
    // Predicated region
    $region46: #{tpu_custom_call.1} parent=1 // pred_check
      _
    $region47: #{tpu_custom_call.1} parent=1 // pred_check_branch
      %68 = sbr.rel (0) target = $region49
    $region48: #{tpu_custom_call.1} parent=1 // pred_region
      _
    $region49: #{tpu_custom_call.1} parent=1 // pred_fallthru
      _
    // Predicated region
    $region50: #{tpu_custom_call.1} parent=1 // pred_check
      _
    $region51: #{tpu_custom_call.1} parent=1 // pred_check_branch
      %70 = sbr.rel (0) target = $region53
    $region52: #{tpu_custom_call.1} parent=1 // pred_region
      _
    $region53: #{tpu_custom_call.1} parent=1 // pred_fallthru
      _
    // Predicated region
    $region54: #{tpu_custom_call.1} parent=1 // pred_check
      _
    $region55: #{tpu_custom_call.1} parent=1 // pred_check_branch
      %72 = sbr.rel (0) target = $region57
    $region56: #{tpu_custom_call.1} parent=1 // pred_region
      _
    $region57: #{tpu_custom_call.1} parent=1 // pred_fallthru
      _
    // Predicated region
    $region58: #{tpu_custom_call.1} parent=1 // pred_check
      _
    $region59: #{tpu_custom_call.1} parent=1 // pred_check_branch
      %74 = sbr.rel (0) target = $region61
    $region60: #{tpu_custom_call.1} parent=1 // pred_region
      _
    $region61: #{tpu_custom_call.1} parent=1 // pred_fallthru
      _
    // Predicated region
    $region62: #{tpu_custom_call.1} parent=1 // pred_check
      _
    $region63: #{tpu_custom_call.1} parent=1 // pred_check_branch
      %76 = sbr.rel (0) target = $region65
    $region64: #{tpu_custom_call.1} parent=1 // pred_region
      %77 = dma.done [#allocation4], 256
    $region65: #{tpu_custom_call.1} parent=1 // pred_fallthru
      _
    // Predicated region
    $region66: #{tpu_custom_call.1} parent=1 // pred_check
      _
    $region67: #{tpu_custom_call.1} parent=1 // pred_check_branch
      %79 = sbr.rel (0) target = $region69
    $region68: #{tpu_custom_call.1} parent=1 // pred_region
      %80 = dma.done [#allocation7], 256
    $region69: #{tpu_custom_call.1} parent=1 // pred_fallthru
      _
    %v81 = vld [vmem:[#allocation3] sm:$0xff]
    %v82 = vld [vmem:[#allocation3 + $0x8] sm:$0xff]
    %v83 = vld [vmem:[%s3] sm:$0xff]
    %v84 = vld [vmem:[%s3 + $0x8] sm:$0xff]
    %v85 = vld [vmem:[%s3 + $0x10] sm:$0xff]
    %v86 = vld [vmem:[%s3 + $0x18] sm:$0xff]
    %v87 = vld [vmem:[%s3 + $0x20] sm:$0xff]
    %v88 = vld [vmem:[%s3 + $0x28] sm:$0xff]
    %v89 = vld [vmem:[%s3 + $0x30] sm:$0xff]
    %v90 = vld [vmem:[%s3 + $0x38] sm:$0xff]
    %vm91 = vcmask 261120
    %v93 = vsel %vm91, %v81, 0
    %v96 = vsel %vm91, %v82, 0
    %98 = vmatprep.subr.mxu0 0.0
    %99 = vmatpush1.msra.mxu0 0.0
    %100 = vmatprep.subr.mxu0 0.0
    %101 = vmatpush1.msra.mxu0 0.0
    %102 = vmatprep.subr.mxu0 0.0
    %103 = vmatpush1.msra.mxu0 0.0
    %104 = vmatprep.subr.mxu0 0.0
    %105 = vmatpush1.msra.mxu0 0.0
    %106 = vmatprep.subr.mxu0 0.0
    %107 = vmatpush1.msra.mxu0 0.0
    %108 = vmatprep.subr.mxu0 0.0
    %109 = vmatpush1.msra.mxu0 0.0
    %110 = vmatprep.subr.mxu0 0.0
    %111 = vmatpush1.msra.mxu0 0.0
    %112 = vmatprep.subr.mxu0 0.0
    %113 = vmatpush1.msra.mxu0 0.0
    %114 = vmatprep.subr.mxu0 0.0
    %115 = vmatpush1.msra.mxu0 0.0
    %116 = vmatprep.subr.mxu0 0.0
    %117 = vmatpush1.msra.mxu0 0.0
    %118 = vmatprep.subr.mxu0 0.0
    %119 = vmatpush1.msra.mxu0 0.0
    %120 = vmatprep.subr.mxu0 0.0
    %121 = vmatpush1.msra.mxu0 0.0
    %122 = vmatprep.subr.mxu0 %v90
    %123 = vmatpush1.msra.mxu0 %v89
    %124 = vmatprep.subr.mxu0 %v88
    %125 = vmatpush1.msra.mxu0 %v87
    %126 = vmatprep.subr.mxu0 %v86
    %127 = vmatpush1.msra.mxu0 %v85
    %128 = vmatprep.subr.mxu0 %v84
    %129 = vmatpush1.msra.mxu0 %v83
    %130 = vmatprep.subr.mxu0 0.0
    %131 = vmatpush2.msra.mxu0 0.0
    %132 = vmatprep.subr.mxu0 0.0
    %133 = vmatpush2.msra.mxu0 0.0
    %134 = vmatprep.subr.mxu0 0.0
    %135 = vmatpush2.msra.mxu0 0.0
    %136 = vmatprep.subr.mxu0 0.0
    %137 = vmatpush2.msra.mxu0 0.0
    %138 = vmatprep.subr.mxu0 0.0
    %139 = vmatpush2.msra.mxu0 0.0
    %140 = vmatprep.subr.mxu0 0.0
    %141 = vmatpush2.msra.mxu0 0.0
    %142 = vmatprep.subr.mxu0 0.0
    %143 = vmatpush2.msra.mxu0 0.0
    %144 = vmatprep.subr.mxu0 0.0
    %145 = vmatpush2.msra.mxu0 0.0
    %146 = vmatprep.subr.mxu0 0.0
    %147 = vmatpush2.msra.mxu0 0.0
    %148 = vmatprep.subr.mxu0 0.0
    %149 = vmatpush2.msra.mxu0 0.0
    %150 = vmatprep.subr.mxu0 0.0
    %151 = vmatpush2.msra.mxu0 0.0
    %152 = vmatprep.subr.mxu0 0.0
    %153 = vmatpush2.msra.mxu0 0.0
    %154 = vmatprep.subr.mxu0 0.0
    %155 = vmatpush2.msra.mxu0 0.0
    %156 = vmatprep.subr.mxu0 0.0
    %157 = vmatpush2.msra.mxu0 0.0
    %158 = vmatprep.subr.mxu0 0.0
    %159 = vmatpush2.msra.mxu0 0.0
    %160 = vmatprep.subr.mxu0 0.0
    %161 = vmatpush2.msra.mxu0 0.0
    %162 = vmatprep.mubr.f32.mxu0 0.0
    %163 = vmatmul.mubr.f32.gmra.mxu0 %v93
    %v164 = vpop.f32.mrf.mxu0
    %v165 = vadd.f32 0.0, %v164
    %v166 = vpop.f32.mrf.mxu0
    %v167 = vadd.f32 0.0, %v166
    %168 = vmatprep.mubr.f32.mxu0 0.0
    %169 = vmatmul.mubr.f32.gmra.mxu0 %v96
    %v170 = vpop.f32.mrf.mxu0
    %v171 = vadd.f32 0.0, %v170
    %v172 = vpop.f32.mrf.mxu0
    %v173 = vadd.f32 0.0, %v172
    %174 = vdwg.mxu0
    %v175 = vlaneseq
    %v176 = vshrl.u32 %v175, 7
    %v177 = vadd.s32 %v176, 8
    %v178 = vlaneseq
    %v179 = vand.u32 %v178, 127
    %vm180 = vcmp.lt.s32.totalorder %v176, 0
    %v181 = vsub.s32 0, %v176
    %v182 = vsel %vm180, %v181, %v176
    %v183 = vshrl.u32 %v182, 3
    %v184 = vand.u32 %v182, 7
    %v185 = vsub.s32 0, %v184
    %v186 = vsel %vm180, %v185, %v184
    %vm187 = vcmp.lt.s32.totalorder %v177, 0
    %v188 = vsub.s32 0, %v177
    %v189 = vsel %vm187, %v188, %v177
    %v190 = vshrl.u32 %v189, 3
    %v191 = vand.u32 %v189, 7
    %v192 = vsub.s32 0, %v191
    %v193 = vsel %vm187, %v192, %v191
    %vm194 = vcmp.ne.s32.totalorder %v186, 0
    %vm195 = vcmp.ne.s32.totalorder %v193, 0
    %vm196 = vcmp.lt.s32.totalorder %v186, 0
    %vm197 = vcmp.lt.s32.totalorder %v193, 0
    %vm198 = vmand %vm196, %vm194
    %vm199 = vmand %vm197, %vm195
    %v200 = vadd.s32 %v186, 8
    %v201 = vadd.s32 %v193, 8
    %v202 = vsel %vm198, %v200, %v186
    %v203 = vsel %vm199, %v201, %v193
    %v204 = vsub.s32 %v176, %v179
    %v205 = vsub.s32 %v177, %v179
    %vm206 = vcmp.eq.s32.totalorder %v204, 1
    %vm207 = vcmp.eq.s32.totalorder %v205, 1
    %vm208 = vcmp.ne.s32.totalorder %v202, 0
    %vm209 = vcmp.ne.s32.totalorder %v203, 0
    %vm210 = vmand %vm206, %vm208
    %vm211 = vmand %vm207, %vm209
    %v212 = vsel %vm210, 1, 0
    %v213 = vsel %vm211, 1, 0
    %v214 = vcvt.s32.f32 %v212
    %v215 = vcvt.s32.f32 %v213
    %v216 = vsub.s32 %v179, %v176
    %v217 = vsub.s32 %v179, %v177
    %vm218 = vcmp.eq.s32.totalorder %v216, 1
    %vm219 = vcmp.eq.s32.totalorder %v217, 1
    %vm220 = vcmp.ne.s32.totalorder %v202, 7
    %vm221 = vcmp.ne.s32.totalorder %v203, 7
    %vm222 = vmand %vm218, %vm220
    %vm223 = vmand %vm219, %vm221
    %v224 = vsel %vm222, 1, 0
    %v225 = vsel %vm223, 1, 0
    %v226 = vcvt.s32.f32 %v224
    %v227 = vcvt.s32.f32 %v225
    %230 = vrot.lane.b32.xlu0 %v165, 64
    %v231 = vpop.permute.xlu0 %230
    %232 = vrot.lane.b32.xlu0 %v171, 64
    %v233 = vpop.permute.xlu0 %232
    %vm236 = vcmask 130048
    %v238 = vsel %vm236, %v214, 0
    %v241 = vsel %vm236, %v215, 0
    %243 = vmatprep.subr.mxu0 0.0
    %244 = vmatpush1.msra.mxu0 0.0
    %245 = vmatprep.subr.mxu0 0.0
    %246 = vmatpush1.msra.mxu0 0.0
    %247 = vmatprep.subr.mxu0 0.0
    %248 = vmatpush1.msra.mxu0 0.0
    %249 = vmatprep.subr.mxu0 0.0
    %250 = vmatpush1.msra.mxu0 0.0
    %251 = vmatprep.subr.mxu0 0.0
    %252 = vmatpush1.msra.mxu0 0.0
    %253 = vmatprep.subr.mxu0 0.0
    %254 = vmatpush1.msra.mxu0 0.0
    %255 = vmatprep.subr.mxu0 0.0
    %256 = vmatpush1.msra.mxu0 0.0
    %257 = vmatprep.subr.mxu0 0.0
    %258 = vmatpush1.msra.mxu0 0.0
    %259 = vmatprep.subr.mxu0 0.0
    %260 = vmatpush1.msra.mxu0 0.0
    %261 = vmatprep.subr.mxu0 0.0
    %262 = vmatpush1.msra.mxu0 0.0
    %263 = vmatprep.subr.mxu0 0.0
    %264 = vmatpush1.msra.mxu0 0.0
    %265 = vmatprep.subr.mxu0 0.0
    %266 = vmatpush1.msra.mxu0 0.0
    %267 = vmatprep.subr.mxu0 0.0
    %268 = vmatpush1.msra.mxu0 0.0
    %269 = vmatprep.subr.mxu0 0.0
    %270 = vmatpush1.msra.mxu0 0.0
    %271 = vmatprep.subr.mxu0 0.0
    %272 = vmatpush1.msra.mxu0 %v171
    %273 = vmatprep.subr.mxu0 0.0
    %274 = vmatpush1.msra.mxu0 %v165
    %275 = vmatprep.subr.mxu0 0.0
    %276 = vmatpush2.msra.mxu0 0.0
    %277 = vmatprep.subr.mxu0 0.0
    %278 = vmatpush2.msra.mxu0 0.0
    %279 = vmatprep.subr.mxu0 0.0
    %280 = vmatpush2.msra.mxu0 0.0
    %281 = vmatprep.subr.mxu0 0.0
    %282 = vmatpush2.msra.mxu0 0.0
    %283 = vmatprep.subr.mxu0 0.0
    %284 = vmatpush2.msra.mxu0 0.0
    %285 = vmatprep.subr.mxu0 0.0
    %286 = vmatpush2.msra.mxu0 0.0
    %287 = vmatprep.subr.mxu0 0.0
    %288 = vmatpush2.msra.mxu0 0.0
    %289 = vmatprep.subr.mxu0 0.0
    %290 = vmatpush2.msra.mxu0 0.0
    %291 = vmatprep.subr.mxu0 0.0
    %292 = vmatpush2.msra.mxu0 0.0
    %293 = vmatprep.subr.mxu0 0.0
    %294 = vmatpush2.msra.mxu0 0.0
    %295 = vmatprep.subr.mxu0 0.0
    %296 = vmatpush2.msra.mxu0 0.0
    %297 = vmatprep.subr.mxu0 0.0
    %298 = vmatpush2.msra.mxu0 0.0
    %299 = vmatprep.subr.mxu0 0.0
    %300 = vmatpush2.msra.mxu0 0.0
    %301 = vmatprep.subr.mxu0 0.0
    %302 = vmatpush2.msra.mxu0 0.0
    %303 = vmatprep.subr.mxu0 0.0
    %304 = vmatpush2.msra.mxu0 0.0
    %305 = vmatprep.subr.mxu0 0.0
    %306 = vmatpush2.msra.mxu0 0.0
    %307 = vmatprep.mubr.f32.mxu0 0.0
    %308 = vmatmul.mubr.f32.gmra.mxu0 %v238
    %v309 = vpop.f32.mrf.mxu0
    %v310 = vadd.f32 %v231, %v309
    %v311 = vpop.f32.mrf.mxu0
    %312 = vmatprep.mubr.f32.mxu0 0.0
    %313 = vmatmul.mubr.f32.gmra.mxu0 %v241
    %v314 = vpop.f32.mrf.mxu0
    %v315 = vadd.f32 %v233, %v314
    %v316 = vpop.f32.mrf.mxu0
    %317 = vdwg.mxu0
    %v319 = vsel %vm236, %v226, 0
    %v322 = vsel %vm236, %v227, 0
    %324 = vmatprep.subr.mxu0 0.0
    %325 = vmatpush1.msra.mxu0 0.0
    %326 = vmatprep.subr.mxu0 0.0
    %327 = vmatpush1.msra.mxu0 0.0
    %328 = vmatprep.subr.mxu0 0.0
    %329 = vmatpush1.msra.mxu0 0.0
    %330 = vmatprep.subr.mxu0 0.0
    %331 = vmatpush1.msra.mxu0 0.0
    %332 = vmatprep.subr.mxu0 0.0
    %333 = vmatpush1.msra.mxu0 0.0
    %334 = vmatprep.subr.mxu0 0.0
    %335 = vmatpush1.msra.mxu0 0.0
    %336 = vmatprep.subr.mxu0 0.0
    %337 = vmatpush1.msra.mxu0 0.0
    %338 = vmatprep.subr.mxu0 0.0
    %339 = vmatpush1.msra.mxu0 0.0
    %340 = vmatprep.subr.mxu0 0.0
    %341 = vmatpush1.msra.mxu0 0.0
    %342 = vmatprep.subr.mxu0 0.0
    %343 = vmatpush1.msra.mxu0 0.0
    %344 = vmatprep.subr.mxu0 0.0
    %345 = vmatpush1.msra.mxu0 0.0
    %346 = vmatprep.subr.mxu0 0.0
    %347 = vmatpush1.msra.mxu0 0.0
    %348 = vmatprep.subr.mxu0 0.0
    %349 = vmatpush1.msra.mxu0 0.0
    %350 = vmatprep.subr.mxu0 0.0
    %351 = vmatpush1.msra.mxu0 0.0
    %352 = vmatprep.subr.mxu0 0.0
    %353 = vmatpush1.msra.mxu0 %v173
    %354 = vmatprep.subr.mxu0 0.0
    %355 = vmatpush1.msra.mxu0 %v167
    %356 = vmatprep.subr.mxu0 0.0
    %357 = vmatpush2.msra.mxu0 0.0
    %358 = vmatprep.subr.mxu0 0.0
    %359 = vmatpush2.msra.mxu0 0.0
    %360 = vmatprep.subr.mxu0 0.0
    %361 = vmatpush2.msra.mxu0 0.0
    %362 = vmatprep.subr.mxu0 0.0
    %363 = vmatpush2.msra.mxu0 0.0
    %364 = vmatprep.subr.mxu0 0.0
    %365 = vmatpush2.msra.mxu0 0.0
    %366 = vmatprep.subr.mxu0 0.0
    %367 = vmatpush2.msra.mxu0 0.0
    %368 = vmatprep.subr.mxu0 0.0
    %369 = vmatpush2.msra.mxu0 0.0
    %370 = vmatprep.subr.mxu0 0.0
    %371 = vmatpush2.msra.mxu0 0.0
    %372 = vmatprep.subr.mxu0 0.0
    %373 = vmatpush2.msra.mxu0 0.0
    %374 = vmatprep.subr.mxu0 0.0
    %375 = vmatpush2.msra.mxu0 0.0
    %376 = vmatprep.subr.mxu0 0.0
    %377 = vmatpush2.msra.mxu0 0.0
    %378 = vmatprep.subr.mxu0 0.0
    %379 = vmatpush2.msra.mxu0 0.0
    %380 = vmatprep.subr.mxu0 0.0
    %381 = vmatpush2.msra.mxu0 0.0
    %382 = vmatprep.subr.mxu0 0.0
    %383 = vmatpush2.msra.mxu0 0.0
    %384 = vmatprep.subr.mxu0 0.0
    %385 = vmatpush2.msra.mxu0 0.0
    %386 = vmatprep.subr.mxu0 0.0
    %387 = vmatpush2.msra.mxu0 0.0
    %388 = vmatprep.mubr.f32.mxu0 0.0
    %389 = vmatmul.mubr.f32.gmra.mxu0 %v319
    %v390 = vpop.f32.mrf.mxu0
    %v391 = vadd.f32 0.0, %v390
    %v392 = vpop.f32.mrf.mxu0
    %393 = vmatprep.mubr.f32.mxu0 0.0
    %394 = vmatmul.mubr.f32.gmra.mxu0 %v322
    %v395 = vpop.f32.mrf.mxu0
    %v396 = vadd.f32 0.0, %v395
    %v397 = vpop.f32.mrf.mxu0
    %398 = vdwg.mxu0
    %v399 = vadd.f32 %v310, %v391
    %v400 = vadd.f32 %v315, %v396
    %v401 = vld [vmem:[%s4] sm:$0x1]
    %v403 = vlaneseq
    %v404 = vshrl.u32 %v403, 7
    %v405 = vsub.s32 0, %v404
    %v406 = vrot.slane %v401, %v405
    %v408 = vadd.f32 %v399, %v406
    %v409 = vadd.f32 %v400, %v406
    %v410 = vmax.f32 %v408, 0.0
    %v411 = vmax.f32 %v409, 0.0
    %v412 = vld [vmem:[%s5] sm:$0xff]
    %v413 = vld [vmem:[%s5 + $0x8] sm:$0xff]
    %v414 = vld [vmem:[%s5 + $0x10] sm:$0xff]
    %v415 = vld [vmem:[%s5 + $0x18] sm:$0xff]
    %v416 = vld [vmem:[%s5 + $0x20] sm:$0xff]
    %v417 = vld [vmem:[%s5 + $0x28] sm:$0xff]
    %v418 = vld [vmem:[%s5 + $0x30] sm:$0xff]
    %v419 = vld [vmem:[%s5 + $0x38] sm:$0xff]
    %v420 = vld [vmem:[%s6] sm:$0x1]
    %v422 = vlaneseq
    %v423 = vshrl.u32 %v422, 7
    %v424 = vsub.s32 0, %v423
    %v425 = vrot.slane %v420, %v424
    %vm427 = vcmask 523264
    %v429 = vsel %vm427, %v410, 0
    %v432 = vsel %vm427, %v411, 0
    %434 = vmatprep.subr.mxu0 0.0
    %435 = vmatpush1.msra.mxu0 0.0
    %436 = vmatprep.subr.mxu0 0.0
    %437 = vmatpush1.msra.mxu0 0.0
    %438 = vmatprep.subr.mxu0 0.0
    %439 = vmatpush1.msra.mxu0 0.0
    %440 = vmatprep.subr.mxu0 0.0
    %441 = vmatpush1.msra.mxu0 0.0
    %442 = vmatprep.subr.mxu0 0.0
    %443 = vmatpush1.msra.mxu0 0.0
    %444 = vmatprep.subr.mxu0 0.0
    %445 = vmatpush1.msra.mxu0 0.0
    %446 = vmatprep.subr.mxu0 0.0
    %447 = vmatpush1.msra.mxu0 0.0
    %448 = vmatprep.subr.mxu0 0.0
    %449 = vmatpush1.msra.mxu0 0.0
    %450 = vmatprep.subr.mxu0 0.0
    %451 = vmatpush1.msra.mxu0 %v419
    %452 = vmatprep.subr.mxu0 0.0
    %453 = vmatpush1.msra.mxu0 %v418
    %454 = vmatprep.subr.mxu0 0.0
    %455 = vmatpush1.msra.mxu0 %v417
    %456 = vmatprep.subr.mxu0 0.0
    %457 = vmatpush1.msra.mxu0 %v416
    %458 = vmatprep.subr.mxu0 0.0
    %459 = vmatpush1.msra.mxu0 %v415
    %460 = vmatprep.subr.mxu0 0.0
    %461 = vmatpush1.msra.mxu0 %v414
    %462 = vmatprep.subr.mxu0 0.0
    %463 = vmatpush1.msra.mxu0 %v413
    %464 = vmatprep.subr.mxu0 0.0
    %465 = vmatpush1.msra.mxu0 %v412
    %466 = vmatprep.subr.mxu0 0.0
    %467 = vmatpush2.msra.mxu0 0.0
    %468 = vmatprep.subr.mxu0 0.0
    %469 = vmatpush2.msra.mxu0 0.0
    %470 = vmatprep.subr.mxu0 0.0
    %471 = vmatpush2.msra.mxu0 0.0
    %472 = vmatprep.subr.mxu0 0.0
    %473 = vmatpush2.msra.mxu0 0.0
    %474 = vmatprep.subr.mxu0 0.0
    %475 = vmatpush2.msra.mxu0 0.0
    %476 = vmatprep.subr.mxu0 0.0
    %477 = vmatpush2.msra.mxu0 0.0
    %478 = vmatprep.subr.mxu0 0.0
    %479 = vmatpush2.msra.mxu0 0.0
    %480 = vmatprep.subr.mxu0 0.0
    %481 = vmatpush2.msra.mxu0 0.0
    %482 = vmatprep.subr.mxu0 0.0
    %483 = vmatpush2.msra.mxu0 0.0
    %484 = vmatprep.subr.mxu0 0.0
    %485 = vmatpush2.msra.mxu0 0.0
    %486 = vmatprep.subr.mxu0 0.0
    %487 = vmatpush2.msra.mxu0 0.0
    %488 = vmatprep.subr.mxu0 0.0
    %489 = vmatpush2.msra.mxu0 0.0
    %490 = vmatprep.subr.mxu0 0.0
    %491 = vmatpush2.msra.mxu0 0.0
    %492 = vmatprep.subr.mxu0 0.0
    %493 = vmatpush2.msra.mxu0 0.0
    %494 = vmatprep.subr.mxu0 0.0
    %495 = vmatpush2.msra.mxu0 0.0
    %496 = vmatprep.subr.mxu0 0.0
    %497 = vmatpush2.msra.mxu0 0.0
    %498 = vmatprep.mubr.f32.mxu0 0.0
    %499 = vmatmul.mubr.f32.gmra.mxu0 %v429
    %v500 = vpop.f32.mrf.mxu0
    %v501 = vadd.f32 %v425, %v500
    %v502 = vpop.f32.mrf.mxu0
    %503 = vmatprep.mubr.f32.mxu0 0.0
    %504 = vmatmul.mubr.f32.gmra.mxu0 %v432
    %v505 = vpop.f32.mrf.mxu0
    %v506 = vadd.f32 %v425, %v505
    %v507 = vpop.f32.mrf.mxu0
    %508 = vdwg.mxu0
    %v509 = vld [vmem:[%s7] sm:$0xff]
    %v510 = vld [vmem:[%s7 + $0x8] sm:$0xff]
    %v511 = vld [vmem:[%s7 + $0x10] sm:$0xff]
    %v512 = vld [vmem:[%s7 + $0x18] sm:$0xff]
    %v513 = vld [vmem:[%s8] sm:$0x1]
    %v515 = vlaneseq
    %v516 = vshrl.u32 %v515, 7
    %v517 = vsub.s32 0, %v516
    %v518 = vrot.slane %v513, %v517
    %v521 = vsel %vm91, %v501, 0
    %v524 = vsel %vm91, %v506, 0
    %526 = vmatprep.subr.mxu0 0.0
    %527 = vmatpush1.msra.mxu0 0.0
    %528 = vmatprep.subr.mxu0 0.0
    %529 = vmatpush1.msra.mxu0 0.0
    %530 = vmatprep.subr.mxu0 0.0
    %531 = vmatpush1.msra.mxu0 0.0
    %532 = vmatprep.subr.mxu0 0.0
    %533 = vmatpush1.msra.mxu0 0.0
    %534 = vmatprep.subr.mxu0 0.0
    %535 = vmatpush1.msra.mxu0 0.0
    %536 = vmatprep.subr.mxu0 0.0
    %537 = vmatpush1.msra.mxu0 0.0
    %538 = vmatprep.subr.mxu0 0.0
    %539 = vmatpush1.msra.mxu0 0.0
    %540 = vmatprep.subr.mxu0 0.0
    %541 = vmatpush1.msra.mxu0 0.0
    %542 = vmatprep.subr.mxu0 0.0
    %543 = vmatpush1.msra.mxu0 0.0
    %544 = vmatprep.subr.mxu0 0.0
    %545 = vmatpush1.msra.mxu0 0.0
    %546 = vmatprep.subr.mxu0 0.0
    %547 = vmatpush1.msra.mxu0 0.0
    %548 = vmatprep.subr.mxu0 0.0
    %549 = vmatpush1.msra.mxu0 0.0
    %550 = vmatprep.subr.mxu0 0.0
    %551 = vmatpush1.msra.mxu0 %v512
    %552 = vmatprep.subr.mxu0 0.0
    %553 = vmatpush1.msra.mxu0 %v511
    %554 = vmatprep.subr.mxu0 0.0
    %555 = vmatpush1.msra.mxu0 %v510
    %556 = vmatprep.subr.mxu0 0.0
    %557 = vmatpush1.msra.mxu0 %v509
    %558 = vmatprep.subr.mxu0 0.0
    %559 = vmatpush2.msra.mxu0 0.0
    %560 = vmatprep.subr.mxu0 0.0
    %561 = vmatpush2.msra.mxu0 0.0
    %562 = vmatprep.subr.mxu0 0.0
    %563 = vmatpush2.msra.mxu0 0.0
    %564 = vmatprep.subr.mxu0 0.0
    %565 = vmatpush2.msra.mxu0 0.0
    %566 = vmatprep.subr.mxu0 0.0
    %567 = vmatpush2.msra.mxu0 0.0
    %568 = vmatprep.subr.mxu0 0.0
    %569 = vmatpush2.msra.mxu0 0.0
    %570 = vmatprep.subr.mxu0 0.0
    %571 = vmatpush2.msra.mxu0 0.0
    %572 = vmatprep.subr.mxu0 0.0
    %573 = vmatpush2.msra.mxu0 0.0
    %574 = vmatprep.subr.mxu0 0.0
    %575 = vmatpush2.msra.mxu0 0.0
    %576 = vmatprep.subr.mxu0 0.0
    %577 = vmatpush2.msra.mxu0 0.0
    %578 = vmatprep.subr.mxu0 0.0
    %579 = vmatpush2.msra.mxu0 0.0
    %580 = vmatprep.subr.mxu0 0.0
    %581 = vmatpush2.msra.mxu0 0.0
    %582 = vmatprep.subr.mxu0 0.0
    %583 = vmatpush2.msra.mxu0 0.0
    %584 = vmatprep.subr.mxu0 0.0
    %585 = vmatpush2.msra.mxu0 0.0
    %586 = vmatprep.subr.mxu0 0.0
    %587 = vmatpush2.msra.mxu0 0.0
    %588 = vmatprep.subr.mxu0 0.0
    %589 = vmatpush2.msra.mxu0 0.0
    %590 = vmatprep.mubr.f32.mxu0 0.0
    %591 = vmatmul.mubr.f32.gmra.mxu0 %v521
    %v592 = vpop.f32.mrf.mxu0
    %v593 = vadd.f32 %v518, %v592
    %v594 = vpop.f32.mrf.mxu0
    %595 = vmatprep.mubr.f32.mxu0 0.0
    %596 = vmatmul.mubr.f32.gmra.mxu0 %v524
    %v597 = vpop.f32.mrf.mxu0
    %v598 = vadd.f32 %v518, %v597
    %v599 = vpop.f32.mrf.mxu0
    %600 = vdwg.mxu0
    %v601 = vmax.f32 %v593, 0.0
    %v602 = vmax.f32 %v598, 0.0
    %v603 = vld [vmem:[%s9] sm:$0xff]
    %v604 = vld [vmem:[%s9 + $0x8] sm:$0xff]
    %v605 = vld [vmem:[%s9 + $0x10] sm:$0xff]
    %v606 = vld [vmem:[%s9 + $0x18] sm:$0xff]
    %v607 = vld [vmem:[%s9 + $0x20] sm:$0xff]
    %v608 = vld [vmem:[%s9 + $0x28] sm:$0xff]
    %v609 = vld [vmem:[%s9 + $0x30] sm:$0xff]
    %v610 = vld [vmem:[%s9 + $0x38] sm:$0xff]
    %v611 = vld [vmem:[%s10] sm:$0x1]
    %v613 = vlaneseq
    %v614 = vshrl.u32 %v613, 7
    %v615 = vsub.s32 0, %v614
    %v616 = vrot.slane %v611, %v615
    %v619 = vsel %vm427, %v601, 0
    %v622 = vsel %vm427, %v602, 0
    %624 = vmatprep.subr.mxu0 0.0
    %625 = vmatpush1.msra.mxu0 0.0
    %626 = vmatprep.subr.mxu0 0.0
    %627 = vmatpush1.msra.mxu0 0.0
    %628 = vmatprep.subr.mxu0 0.0
    %629 = vmatpush1.msra.mxu0 0.0
    %630 = vmatprep.subr.mxu0 0.0
    %631 = vmatpush1.msra.mxu0 0.0
    %632 = vmatprep.subr.mxu0 0.0
    %633 = vmatpush1.msra.mxu0 0.0
    %634 = vmatprep.subr.mxu0 0.0
    %635 = vmatpush1.msra.mxu0 0.0
    %636 = vmatprep.subr.mxu0 0.0
    %637 = vmatpush1.msra.mxu0 0.0
    %638 = vmatprep.subr.mxu0 0.0
    %639 = vmatpush1.msra.mxu0 0.0
    %640 = vmatprep.subr.mxu0 0.0
    %641 = vmatpush1.msra.mxu0 %v610
    %642 = vmatprep.subr.mxu0 0.0
    %643 = vmatpush1.msra.mxu0 %v609
    %644 = vmatprep.subr.mxu0 0.0
    %645 = vmatpush1.msra.mxu0 %v608
    %646 = vmatprep.subr.mxu0 0.0
    %647 = vmatpush1.msra.mxu0 %v607
    %648 = vmatprep.subr.mxu0 0.0
    %649 = vmatpush1.msra.mxu0 %v606
    %650 = vmatprep.subr.mxu0 0.0
    %651 = vmatpush1.msra.mxu0 %v605
    %652 = vmatprep.subr.mxu0 0.0
    %653 = vmatpush1.msra.mxu0 %v604
    %654 = vmatprep.subr.mxu0 0.0
    %655 = vmatpush1.msra.mxu0 %v603
    %656 = vmatprep.subr.mxu0 0.0
    %657 = vmatpush2.msra.mxu0 0.0
    %658 = vmatprep.subr.mxu0 0.0
    %659 = vmatpush2.msra.mxu0 0.0
    %660 = vmatprep.subr.mxu0 0.0
    %661 = vmatpush2.msra.mxu0 0.0
    %662 = vmatprep.subr.mxu0 0.0
    %663 = vmatpush2.msra.mxu0 0.0
    %664 = vmatprep.subr.mxu0 0.0
    %665 = vmatpush2.msra.mxu0 0.0
    %666 = vmatprep.subr.mxu0 0.0
    %667 = vmatpush2.msra.mxu0 0.0
    %668 = vmatprep.subr.mxu0 0.0
    %669 = vmatpush2.msra.mxu0 0.0
    %670 = vmatprep.subr.mxu0 0.0
    %671 = vmatpush2.msra.mxu0 0.0
    %672 = vmatprep.subr.mxu0 0.0
    %673 = vmatpush2.msra.mxu0 0.0
    %674 = vmatprep.subr.mxu0 0.0
    %675 = vmatpush2.msra.mxu0 0.0
    %676 = vmatprep.subr.mxu0 0.0
    %677 = vmatpush2.msra.mxu0 0.0
    %678 = vmatprep.subr.mxu0 0.0
    %679 = vmatpush2.msra.mxu0 0.0
    %680 = vmatprep.subr.mxu0 0.0
    %681 = vmatpush2.msra.mxu0 0.0
    %682 = vmatprep.subr.mxu0 0.0
    %683 = vmatpush2.msra.mxu0 0.0
    %684 = vmatprep.subr.mxu0 0.0
    %685 = vmatpush2.msra.mxu0 0.0
    %686 = vmatprep.subr.mxu0 0.0
    %687 = vmatpush2.msra.mxu0 0.0
    %688 = vmatprep.mubr.f32.mxu0 0.0
    %689 = vmatmul.mubr.f32.gmra.mxu0 %v619
    %v690 = vpop.f32.mrf.mxu0
    %v691 = vadd.f32 %v616, %v690
    %v692 = vpop.f32.mrf.mxu0
    %693 = vmatprep.mubr.f32.mxu0 0.0
    %694 = vmatmul.mubr.f32.gmra.mxu0 %v622
    %v695 = vpop.f32.mrf.mxu0
    %v696 = vadd.f32 %v616, %v695
    %v697 = vpop.f32.mrf.mxu0
    %698 = vdwg.mxu0
    %v699 = vtanh.pop %v691
    %v700 = vtanh.pop %v696
    %v701 = vld [vmem:[#allocation6] sm:$0xff]
    %v702 = vld [vmem:[#allocation6 + $0x8] sm:$0xff]
    %v703 = vld [vmem:[#allocation2] sm:$0x1]
    %v705 = vlaneseq
    %v706 = vshrl.u32 %v705, 7
    %v707 = vsub.s32 0, %v706
    %v708 = vrot.slane %v703, %v707
    %709 = vset.pattern.permute.xlu0 0
    %710 = vperm.xlu0 %709, %v708
    %v711 = vpop.permute.xlu0 %710
    %vm713 = vcmp.lt.f32.partialorder %v701, %v711
    %vm714 = vcmp.lt.f32.partialorder %v702, %v711
    %v715 = vadd.f32 %v81, %v699
    %v716 = vadd.f32 %v82, %v700
    %v717 = vsel %vm713, %v715, %v81
    %v718 = vsel %vm714, %v716, %v82
    %v719 = vld [vmem:[%s11] sm:$0xff]
    %v720 = vld [vmem:[%s11 + $0x8] sm:$0xff]
    %v721 = vld [vmem:[%s11 + $0x10] sm:$0xff]
    %v722 = vld [vmem:[%s11 + $0x18] sm:$0xff]
    %v723 = vld [vmem:[%s12] sm:$0x1]
    %v725 = vlaneseq
    %v726 = vshrl.u32 %v725, 7
    %v727 = vsub.s32 0, %v726
    %v728 = vrot.slane %v723, %v727
    %v731 = vsel %vm91, %v717, 0
    %v734 = vsel %vm91, %v718, 0
    %736 = vmatprep.subr.mxu0 0.0
    %737 = vmatpush1.msra.mxu0 0.0
    %738 = vmatprep.subr.mxu0 0.0
    %739 = vmatpush1.msra.mxu0 0.0
    %740 = vmatprep.subr.mxu0 0.0
    %741 = vmatpush1.msra.mxu0 0.0
    %742 = vmatprep.subr.mxu0 0.0
    %743 = vmatpush1.msra.mxu0 0.0
    %744 = vmatprep.subr.mxu0 0.0
    %745 = vmatpush1.msra.mxu0 0.0
    %746 = vmatprep.subr.mxu0 0.0
    %747 = vmatpush1.msra.mxu0 0.0
    %748 = vmatprep.subr.mxu0 0.0
    %749 = vmatpush1.msra.mxu0 0.0
    %750 = vmatprep.subr.mxu0 0.0
    %751 = vmatpush1.msra.mxu0 0.0
    %752 = vmatprep.subr.mxu0 0.0
    %753 = vmatpush1.msra.mxu0 0.0
    %754 = vmatprep.subr.mxu0 0.0
    %755 = vmatpush1.msra.mxu0 0.0
    %756 = vmatprep.subr.mxu0 0.0
    %757 = vmatpush1.msra.mxu0 0.0
    %758 = vmatprep.subr.mxu0 0.0
    %759 = vmatpush1.msra.mxu0 0.0
    %760 = vmatprep.subr.mxu0 0.0
    %761 = vmatpush1.msra.mxu0 %v722
    %762 = vmatprep.subr.mxu0 0.0
    %763 = vmatpush1.msra.mxu0 %v721
    %764 = vmatprep.subr.mxu0 0.0
    %765 = vmatpush1.msra.mxu0 %v720
    %766 = vmatprep.subr.mxu0 0.0
    %767 = vmatpush1.msra.mxu0 %v719
    %768 = vmatprep.subr.mxu0 0.0
    %769 = vmatpush2.msra.mxu0 0.0
    %770 = vmatprep.subr.mxu0 0.0
    %771 = vmatpush2.msra.mxu0 0.0
    %772 = vmatprep.subr.mxu0 0.0
    %773 = vmatpush2.msra.mxu0 0.0
    %774 = vmatprep.subr.mxu0 0.0
    %775 = vmatpush2.msra.mxu0 0.0
    %776 = vmatprep.subr.mxu0 0.0
    %777 = vmatpush2.msra.mxu0 0.0
    %778 = vmatprep.subr.mxu0 0.0
    %779 = vmatpush2.msra.mxu0 0.0
    %780 = vmatprep.subr.mxu0 0.0
    %781 = vmatpush2.msra.mxu0 0.0
    %782 = vmatprep.subr.mxu0 0.0
    %783 = vmatpush2.msra.mxu0 0.0
    %784 = vmatprep.subr.mxu0 0.0
    %785 = vmatpush2.msra.mxu0 0.0
    %786 = vmatprep.subr.mxu0 0.0
    %787 = vmatpush2.msra.mxu0 0.0
    %788 = vmatprep.subr.mxu0 0.0
    %789 = vmatpush2.msra.mxu0 0.0
    %790 = vmatprep.subr.mxu0 0.0
    %791 = vmatpush2.msra.mxu0 0.0
    %792 = vmatprep.subr.mxu0 0.0
    %793 = vmatpush2.msra.mxu0 0.0
    %794 = vmatprep.subr.mxu0 0.0
    %795 = vmatpush2.msra.mxu0 0.0
    %796 = vmatprep.subr.mxu0 0.0
    %797 = vmatpush2.msra.mxu0 0.0
    %798 = vmatprep.subr.mxu0 0.0
    %799 = vmatpush2.msra.mxu0 0.0
    %800 = vmatprep.mubr.f32.mxu0 0.0
    %801 = vmatmul.mubr.f32.gmra.mxu0 %v731
    %v802 = vpop.f32.mrf.mxu0
    %v803 = vadd.f32 %v728, %v802
    %v804 = vpop.f32.mrf.mxu0
    %805 = vmatprep.mubr.f32.mxu0 0.0
    %806 = vmatmul.mubr.f32.gmra.mxu0 %v734
    %v807 = vpop.f32.mrf.mxu0
    %v808 = vadd.f32 %v728, %v807
    %v809 = vpop.f32.mrf.mxu0
    %810 = vdwg.mxu0
    %v811 = vld [vmem:[%s13] sm:$0xff]
    %v812 = vld [vmem:[%s13 + $0x8] sm:$0xff]
    %v813 = vld [vmem:[%s13 + $0x10] sm:$0xff]
    %v814 = vld [vmem:[%s13 + $0x18] sm:$0xff]
    %816 = vrot.lane.b32.xlu0 %v803, 96
    %v817 = vpop.permute.xlu0 %816
    %vm818 = vcmask 64512
    %v819 = vsel %vm818, %v803, 0
    %v821 = vsel %vm818, %v817, 0
    %823 = vmatprep.subr.mxu0 0.0
    %824 = vmatpush1.xpose.msra.mxu0 0.0
    %825 = vmatprep.subr.mxu0 0.0
    %826 = vmatpush1.xpose.msra.mxu0 0.0
    %827 = vmatprep.subr.mxu0 0.0
    %828 = vmatpush1.xpose.msra.mxu0 0.0
    %829 = vmatprep.subr.mxu0 0.0
    %830 = vmatpush1.xpose.msra.mxu0 0.0
    %831 = vmatprep.subr.mxu0 0.0
    %832 = vmatpush1.xpose.msra.mxu0 0.0
    %833 = vmatprep.subr.mxu0 0.0
    %834 = vmatpush1.xpose.msra.mxu0 0.0
    %835 = vmatprep.subr.mxu0 0.0
    %836 = vmatpush1.xpose.msra.mxu0 0.0
    %837 = vmatprep.subr.mxu0 0.0
    %838 = vmatpush1.xpose.msra.mxu0 0.0
    %839 = vmatprep.subr.mxu0 0.0
    %840 = vmatpush1.xpose.msra.mxu0 0.0
    %841 = vmatprep.subr.mxu0 0.0
    %842 = vmatpush1.xpose.msra.mxu0 0.0
    %843 = vmatprep.subr.mxu0 0.0
    %844 = vmatpush1.xpose.msra.mxu0 0.0
    %845 = vmatprep.subr.mxu0 0.0
    %846 = vmatpush1.xpose.msra.mxu0 0.0
    %847 = vmatprep.subr.mxu0 0.0
    %848 = vmatpush1.xpose.msra.mxu0 0.0
    %849 = vmatprep.subr.mxu0 0.0
    %850 = vmatpush1.xpose.msra.mxu0 0.0
    %851 = vmatprep.subr.mxu0 0.0
    %852 = vmatpush1.xpose.msra.mxu0 0.0
    %853 = vmatprep.subr.mxu0 0.0
    %854 = vmatpush1.xpose.msra.mxu0 %v821
    %855 = vmatprep.subr.mxu0 0.0
    %856 = vmatpush2.xpose.msra.mxu0 0.0
    %857 = vmatprep.subr.mxu0 0.0
    %858 = vmatpush2.xpose.msra.mxu0 0.0
    %859 = vmatprep.subr.mxu0 0.0
    %860 = vmatpush2.xpose.msra.mxu0 0.0
    %861 = vmatprep.subr.mxu0 0.0
    %862 = vmatpush2.xpose.msra.mxu0 0.0
    %863 = vmatprep.subr.mxu0 0.0
    %864 = vmatpush2.xpose.msra.mxu0 0.0
    %865 = vmatprep.subr.mxu0 0.0
    %866 = vmatpush2.xpose.msra.mxu0 0.0
    %867 = vmatprep.subr.mxu0 0.0
    %868 = vmatpush2.xpose.msra.mxu0 0.0
    %869 = vmatprep.subr.mxu0 0.0
    %870 = vmatpush2.xpose.msra.mxu0 0.0
    %871 = vmatprep.subr.mxu0 0.0
    %872 = vmatpush2.xpose.msra.mxu0 0.0
    %873 = vmatprep.subr.mxu0 0.0
    %874 = vmatpush2.xpose.msra.mxu0 0.0
    %875 = vmatprep.subr.mxu0 0.0
    %876 = vmatpush2.xpose.msra.mxu0 0.0
    %877 = vmatprep.subr.mxu0 0.0
    %878 = vmatpush2.xpose.msra.mxu0 0.0
    %879 = vmatprep.subr.mxu0 0.0
    %880 = vmatpush2.xpose.msra.mxu0 0.0
    %881 = vmatprep.subr.mxu0 0.0
    %882 = vmatpush2.xpose.msra.mxu0 0.0
    %883 = vmatprep.subr.mxu0 0.0
    %884 = vmatpush2.xpose.msra.mxu0 0.0
    %885 = vmatprep.subr.mxu0 0.0
    %886 = vmatpush2.xpose.msra.mxu0 0.0
    %887 = vmatprep.mubr.f32.mxu0 0.0
    %888 = vmatmul.mubr.f32.gmra.mxu0 %v819
    %v889 = vpop.f32.mrf.mxu0
    %v890 = vadd.f32 0.0, %v889
    %v891 = vpop.f32.mrf.mxu0
    %892 = vdwg.mxu0
    %894 = vrot.lane.b32.xlu0 %v808, 96
    %v895 = vpop.permute.xlu0 %894
    %v896 = vsel %vm818, %v808, 0
    %v898 = vsel %vm818, %v895, 0
    %900 = vmatprep.subr.mxu0 0.0
    %901 = vmatpush1.xpose.msra.mxu0 0.0
    %902 = vmatprep.subr.mxu0 0.0
    %903 = vmatpush1.xpose.msra.mxu0 0.0
    %904 = vmatprep.subr.mxu0 0.0
    %905 = vmatpush1.xpose.msra.mxu0 0.0
    %906 = vmatprep.subr.mxu0 0.0
    %907 = vmatpush1.xpose.msra.mxu0 0.0
    %908 = vmatprep.subr.mxu0 0.0
    %909 = vmatpush1.xpose.msra.mxu0 0.0
    %910 = vmatprep.subr.mxu0 0.0
    %911 = vmatpush1.xpose.msra.mxu0 0.0
    %912 = vmatprep.subr.mxu0 0.0
    %913 = vmatpush1.xpose.msra.mxu0 0.0
    %914 = vmatprep.subr.mxu0 0.0
    %915 = vmatpush1.xpose.msra.mxu0 0.0
    %916 = vmatprep.subr.mxu0 0.0
    %917 = vmatpush1.xpose.msra.mxu0 0.0
    %918 = vmatprep.subr.mxu0 0.0
    %919 = vmatpush1.xpose.msra.mxu0 0.0
    %920 = vmatprep.subr.mxu0 0.0
    %921 = vmatpush1.xpose.msra.mxu0 0.0
    %922 = vmatprep.subr.mxu0 0.0
    %923 = vmatpush1.xpose.msra.mxu0 0.0
    %924 = vmatprep.subr.mxu0 0.0
    %925 = vmatpush1.xpose.msra.mxu0 0.0
    %926 = vmatprep.subr.mxu0 0.0
    %927 = vmatpush1.xpose.msra.mxu0 0.0
    %928 = vmatprep.subr.mxu0 0.0
    %929 = vmatpush1.xpose.msra.mxu0 0.0
    %930 = vmatprep.subr.mxu0 0.0
    %931 = vmatpush1.xpose.msra.mxu0 %v898
    %932 = vmatprep.subr.mxu0 0.0
    %933 = vmatpush2.xpose.msra.mxu0 0.0
    %934 = vmatprep.subr.mxu0 0.0
    %935 = vmatpush2.xpose.msra.mxu0 0.0
    %936 = vmatprep.subr.mxu0 0.0
    %937 = vmatpush2.xpose.msra.mxu0 0.0
    %938 = vmatprep.subr.mxu0 0.0
    %939 = vmatpush2.xpose.msra.mxu0 0.0
    %940 = vmatprep.subr.mxu0 0.0
    %941 = vmatpush2.xpose.msra.mxu0 0.0
    %942 = vmatprep.subr.mxu0 0.0
    %943 = vmatpush2.xpose.msra.mxu0 0.0
    %944 = vmatprep.subr.mxu0 0.0
    %945 = vmatpush2.xpose.msra.mxu0 0.0
    %946 = vmatprep.subr.mxu0 0.0
    %947 = vmatpush2.xpose.msra.mxu0 0.0
    %948 = vmatprep.subr.mxu0 0.0
    %949 = vmatpush2.xpose.msra.mxu0 0.0
    %950 = vmatprep.subr.mxu0 0.0
    %951 = vmatpush2.xpose.msra.mxu0 0.0
    %952 = vmatprep.subr.mxu0 0.0
    %953 = vmatpush2.xpose.msra.mxu0 0.0
    %954 = vmatprep.subr.mxu0 0.0
    %955 = vmatpush2.xpose.msra.mxu0 0.0
    %956 = vmatprep.subr.mxu0 0.0
    %957 = vmatpush2.xpose.msra.mxu0 0.0
    %958 = vmatprep.subr.mxu0 0.0
    %959 = vmatpush2.xpose.msra.mxu0 0.0
    %960 = vmatprep.subr.mxu0 0.0
    %961 = vmatpush2.xpose.msra.mxu0 0.0
    %962 = vmatprep.subr.mxu0 0.0
    %963 = vmatpush2.xpose.msra.mxu0 0.0
    %964 = vmatprep.mubr.f32.mxu0 0.0
    %965 = vmatmul.mubr.f32.gmra.mxu0 %v896
    %v966 = vpop.f32.mrf.mxu0
    %v967 = vadd.f32 0.0, %v966
    %v968 = vpop.f32.mrf.mxu0
    %969 = vdwg.mxu0
    %v970 = vsel %vm818, %v890, -inf
    %971 = vmax.xlane.f32.xlu0 %v970
    %v972 = vpop.xlane.xlu0 %971
    %v973 = vsel %vm818, %v967, -inf
    %974 = vmax.xlane.f32.xlu0 %v973
    %v975 = vpop.xlane.xlu0 %974
    %v976 = vsub.f32 %v890, %v972
    %v977 = vsub.f32 %v967, %v975
    %v978 = vmul.f32 %v976, 1.442695
    %v979 = vpow.pop %v978
    %v980 = vmul.f32 %v977, 1.442695
    %v981 = vpow.pop %v980
    %v982 = vsel %vm818, %v979, 0.0
    %983 = vadd.xlane.f32.xlu0 %v982
    %v984 = vpop.xlane.xlu0 %983
    %v985 = vsel %vm818, %v981, 0.0
    %986 = vadd.xlane.f32.xlu0 %v985
    %v987 = vpop.xlane.xlu0 %986
    %v988 = vrcp.pop %v984
    %v989 = vmul.f32 1.0, %v988
    %v990 = vrcp.pop %v987
    %v991 = vmul.f32 1.0, %v990
    %v992 = vmul.f32 %v979, %v989
    %v993 = vmul.f32 %v981, %v991
    %994 = vrot.lane.b32.xlu0 %v803, 64
    %v995 = vpop.permute.xlu0 %994
    %v998 = vsel %vm818, %v992, 0
    %1000 = vmatprep.subr.mxu0 0.0
    %1001 = vmatpush1.msra.mxu0 0.0
    %1002 = vmatprep.subr.mxu0 0.0
    %1003 = vmatpush1.msra.mxu0 0.0
    %1004 = vmatprep.subr.mxu0 0.0
    %1005 = vmatpush1.msra.mxu0 0.0
    %1006 = vmatprep.subr.mxu0 0.0
    %1007 = vmatpush1.msra.mxu0 0.0
    %1008 = vmatprep.subr.mxu0 0.0
    %1009 = vmatpush1.msra.mxu0 0.0
    %1010 = vmatprep.subr.mxu0 0.0
    %1011 = vmatpush1.msra.mxu0 0.0
    %1012 = vmatprep.subr.mxu0 0.0
    %1013 = vmatpush1.msra.mxu0 0.0
    %1014 = vmatprep.subr.mxu0 0.0
    %1015 = vmatpush1.msra.mxu0 0.0
    %1016 = vmatprep.subr.mxu0 0.0
    %1017 = vmatpush1.msra.mxu0 0.0
    %1018 = vmatprep.subr.mxu0 0.0
    %1019 = vmatpush1.msra.mxu0 0.0
    %1020 = vmatprep.subr.mxu0 0.0
    %1021 = vmatpush1.msra.mxu0 0.0
    %1022 = vmatprep.subr.mxu0 0.0
    %1023 = vmatpush1.msra.mxu0 0.0
    %1024 = vmatprep.subr.mxu0 0.0
    %1025 = vmatpush1.msra.mxu0 0.0
    %1026 = vmatprep.subr.mxu0 0.0
    %1027 = vmatpush1.msra.mxu0 0.0
    %1028 = vmatprep.subr.mxu0 0.0
    %1029 = vmatpush1.msra.mxu0 0.0
    %1030 = vmatprep.subr.mxu0 0.0
    %1031 = vmatpush1.msra.mxu0 %v995
    %1032 = vmatprep.subr.mxu0 0.0
    %1033 = vmatpush2.msra.mxu0 0.0
    %1034 = vmatprep.subr.mxu0 0.0
    %1035 = vmatpush2.msra.mxu0 0.0
    %1036 = vmatprep.subr.mxu0 0.0
    %1037 = vmatpush2.msra.mxu0 0.0
    %1038 = vmatprep.subr.mxu0 0.0
    %1039 = vmatpush2.msra.mxu0 0.0
    %1040 = vmatprep.subr.mxu0 0.0
    %1041 = vmatpush2.msra.mxu0 0.0
    %1042 = vmatprep.subr.mxu0 0.0
    %1043 = vmatpush2.msra.mxu0 0.0
    %1044 = vmatprep.subr.mxu0 0.0
    %1045 = vmatpush2.msra.mxu0 0.0
    %1046 = vmatprep.subr.mxu0 0.0
    %1047 = vmatpush2.msra.mxu0 0.0
    %1048 = vmatprep.subr.mxu0 0.0
    %1049 = vmatpush2.msra.mxu0 0.0
    %1050 = vmatprep.subr.mxu0 0.0
    %1051 = vmatpush2.msra.mxu0 0.0
    %1052 = vmatprep.subr.mxu0 0.0
    %1053 = vmatpush2.msra.mxu0 0.0
    %1054 = vmatprep.subr.mxu0 0.0
    %1055 = vmatpush2.msra.mxu0 0.0
    %1056 = vmatprep.subr.mxu0 0.0
    %1057 = vmatpush2.msra.mxu0 0.0
    %1058 = vmatprep.subr.mxu0 0.0
    %1059 = vmatpush2.msra.mxu0 0.0
    %1060 = vmatprep.subr.mxu0 0.0
    %1061 = vmatpush2.msra.mxu0 0.0
    %1062 = vmatprep.subr.mxu0 0.0
    %1063 = vmatpush2.msra.mxu0 0.0
    %1064 = vmatprep.mubr.f32.mxu0 0.0
    %1065 = vmatmul.mubr.f32.gmra.mxu0 %v998
    %v1066 = vpop.f32.mrf.mxu0
    %v1067 = vadd.f32 0.0, %v1066
    %v1068 = vpop.f32.mrf.mxu0
    %1069 = vdwg.mxu0
    %1070 = vrot.lane.b32.xlu0 %v808, 64
    %v1071 = vpop.permute.xlu0 %1070
    %v1074 = vsel %vm818, %v993, 0
    %1076 = vmatprep.subr.mxu0 0.0
    %1077 = vmatpush1.msra.mxu0 0.0
    %1078 = vmatprep.subr.mxu0 0.0
    %1079 = vmatpush1.msra.mxu0 0.0
    %1080 = vmatprep.subr.mxu0 0.0
    %1081 = vmatpush1.msra.mxu0 0.0
    %1082 = vmatprep.subr.mxu0 0.0
    %1083 = vmatpush1.msra.mxu0 0.0
    %1084 = vmatprep.subr.mxu0 0.0
    %1085 = vmatpush1.msra.mxu0 0.0
    %1086 = vmatprep.subr.mxu0 0.0
    %1087 = vmatpush1.msra.mxu0 0.0
    %1088 = vmatprep.subr.mxu0 0.0
    %1089 = vmatpush1.msra.mxu0 0.0
    %1090 = vmatprep.subr.mxu0 0.0
    %1091 = vmatpush1.msra.mxu0 0.0
    %1092 = vmatprep.subr.mxu0 0.0
    %1093 = vmatpush1.msra.mxu0 0.0
    %1094 = vmatprep.subr.mxu0 0.0
    %1095 = vmatpush1.msra.mxu0 0.0
    %1096 = vmatprep.subr.mxu0 0.0
    %1097 = vmatpush1.msra.mxu0 0.0
    %1098 = vmatprep.subr.mxu0 0.0
    %1099 = vmatpush1.msra.mxu0 0.0
    %1100 = vmatprep.subr.mxu0 0.0
    %1101 = vmatpush1.msra.mxu0 0.0
    %1102 = vmatprep.subr.mxu0 0.0
    %1103 = vmatpush1.msra.mxu0 0.0
    %1104 = vmatprep.subr.mxu0 0.0
    %1105 = vmatpush1.msra.mxu0 0.0
    %1106 = vmatprep.subr.mxu0 0.0
    %1107 = vmatpush1.msra.mxu0 %v1071
    %1108 = vmatprep.subr.mxu0 0.0
    %1109 = vmatpush2.msra.mxu0 0.0
    %1110 = vmatprep.subr.mxu0 0.0
    %1111 = vmatpush2.msra.mxu0 0.0
    %1112 = vmatprep.subr.mxu0 0.0
    %1113 = vmatpush2.msra.mxu0 0.0
    %1114 = vmatprep.subr.mxu0 0.0
    %1115 = vmatpush2.msra.mxu0 0.0
    %1116 = vmatprep.subr.mxu0 0.0
    %1117 = vmatpush2.msra.mxu0 0.0
    %1118 = vmatprep.subr.mxu0 0.0
    %1119 = vmatpush2.msra.mxu0 0.0
    %1120 = vmatprep.subr.mxu0 0.0
    %1121 = vmatpush2.msra.mxu0 0.0
    %1122 = vmatprep.subr.mxu0 0.0
    %1123 = vmatpush2.msra.mxu0 0.0
    %1124 = vmatprep.subr.mxu0 0.0
    %1125 = vmatpush2.msra.mxu0 0.0
    %1126 = vmatprep.subr.mxu0 0.0
    %1127 = vmatpush2.msra.mxu0 0.0
    %1128 = vmatprep.subr.mxu0 0.0
    %1129 = vmatpush2.msra.mxu0 0.0
    %1130 = vmatprep.subr.mxu0 0.0
    %1131 = vmatpush2.msra.mxu0 0.0
    %1132 = vmatprep.subr.mxu0 0.0
    %1133 = vmatpush2.msra.mxu0 0.0
    %1134 = vmatprep.subr.mxu0 0.0
    %1135 = vmatpush2.msra.mxu0 0.0
    %1136 = vmatprep.subr.mxu0 0.0
    %1137 = vmatpush2.msra.mxu0 0.0
    %1138 = vmatprep.subr.mxu0 0.0
    %1139 = vmatpush2.msra.mxu0 0.0
    %1140 = vmatprep.mubr.f32.mxu0 0.0
    %1141 = vmatmul.mubr.f32.gmra.mxu0 %v1074
    %v1142 = vpop.f32.mrf.mxu0
    %v1143 = vadd.f32 0.0, %v1142
    %v1144 = vpop.f32.mrf.mxu0
    %1145 = vdwg.mxu0
    %1146 = vrot.lane.b32.xlu0 %v803, 120
    %v1147 = vpop.permute.xlu0 %1146
    %1148 = vrot.lane.b32.xlu0 %v803, 88
    %v1149 = vpop.permute.xlu0 %1148
    %v1150 = vsel %vm818, %v1147, 0
    %v1152 = vsel %vm818, %v1149, 0
    %1154 = vmatprep.subr.mxu0 0.0
    %1155 = vmatpush1.xpose.msra.mxu0 0.0
    %1156 = vmatprep.subr.mxu0 0.0
    %1157 = vmatpush1.xpose.msra.mxu0 0.0
    %1158 = vmatprep.subr.mxu0 0.0
    %1159 = vmatpush1.xpose.msra.mxu0 0.0
    %1160 = vmatprep.subr.mxu0 0.0
    %1161 = vmatpush1.xpose.msra.mxu0 0.0
    %1162 = vmatprep.subr.mxu0 0.0
    %1163 = vmatpush1.xpose.msra.mxu0 0.0
    %1164 = vmatprep.subr.mxu0 0.0
    %1165 = vmatpush1.xpose.msra.mxu0 0.0
    %1166 = vmatprep.subr.mxu0 0.0
    %1167 = vmatpush1.xpose.msra.mxu0 0.0
    %1168 = vmatprep.subr.mxu0 0.0
    %1169 = vmatpush1.xpose.msra.mxu0 0.0
    %1170 = vmatprep.subr.mxu0 0.0
    %1171 = vmatpush1.xpose.msra.mxu0 0.0
    %1172 = vmatprep.subr.mxu0 0.0
    %1173 = vmatpush1.xpose.msra.mxu0 0.0
    %1174 = vmatprep.subr.mxu0 0.0
    %1175 = vmatpush1.xpose.msra.mxu0 0.0
    %1176 = vmatprep.subr.mxu0 0.0
    %1177 = vmatpush1.xpose.msra.mxu0 0.0
    %1178 = vmatprep.subr.mxu0 0.0
    %1179 = vmatpush1.xpose.msra.mxu0 0.0
    %1180 = vmatprep.subr.mxu0 0.0
    %1181 = vmatpush1.xpose.msra.mxu0 0.0
    %1182 = vmatprep.subr.mxu0 0.0
    %1183 = vmatpush1.xpose.msra.mxu0 0.0
    %1184 = vmatprep.subr.mxu0 0.0
    %1185 = vmatpush1.xpose.msra.mxu0 %v1152
    %1186 = vmatprep.subr.mxu0 0.0
    %1187 = vmatpush2.xpose.msra.mxu0 0.0
    %1188 = vmatprep.subr.mxu0 0.0
    %1189 = vmatpush2.xpose.msra.mxu0 0.0
    %1190 = vmatprep.subr.mxu0 0.0
    %1191 = vmatpush2.xpose.msra.mxu0 0.0
    %1192 = vmatprep.subr.mxu0 0.0
    %1193 = vmatpush2.xpose.msra.mxu0 0.0
    %1194 = vmatprep.subr.mxu0 0.0
    %1195 = vmatpush2.xpose.msra.mxu0 0.0
    %1196 = vmatprep.subr.mxu0 0.0
    %1197 = vmatpush2.xpose.msra.mxu0 0.0
    %1198 = vmatprep.subr.mxu0 0.0
    %1199 = vmatpush2.xpose.msra.mxu0 0.0
    %1200 = vmatprep.subr.mxu0 0.0
    %1201 = vmatpush2.xpose.msra.mxu0 0.0
    %1202 = vmatprep.subr.mxu0 0.0
    %1203 = vmatpush2.xpose.msra.mxu0 0.0
    %1204 = vmatprep.subr.mxu0 0.0
    %1205 = vmatpush2.xpose.msra.mxu0 0.0
    %1206 = vmatprep.subr.mxu0 0.0
    %1207 = vmatpush2.xpose.msra.mxu0 0.0
    %1208 = vmatprep.subr.mxu0 0.0
    %1209 = vmatpush2.xpose.msra.mxu0 0.0
    %1210 = vmatprep.subr.mxu0 0.0
    %1211 = vmatpush2.xpose.msra.mxu0 0.0
    %1212 = vmatprep.subr.mxu0 0.0
    %1213 = vmatpush2.xpose.msra.mxu0 0.0
    %1214 = vmatprep.subr.mxu0 0.0
    %1215 = vmatpush2.xpose.msra.mxu0 0.0
    %1216 = vmatprep.subr.mxu0 0.0
    %1217 = vmatpush2.xpose.msra.mxu0 0.0
    %1218 = vmatprep.mubr.f32.mxu0 0.0
    %1219 = vmatmul.mubr.f32.gmra.mxu0 %v1150
    %v1220 = vpop.f32.mrf.mxu0
    %v1221 = vadd.f32 0.0, %v1220
    %v1222 = vpop.f32.mrf.mxu0
    %1223 = vdwg.mxu0
    %1224 = vrot.lane.b32.xlu0 %v808, 120
    %v1225 = vpop.permute.xlu0 %1224
    %1226 = vrot.lane.b32.xlu0 %v808, 88
    %v1227 = vpop.permute.xlu0 %1226
    %v1228 = vsel %vm818, %v1225, 0
    %v1230 = vsel %vm818, %v1227, 0
    %1232 = vmatprep.subr.mxu0 0.0
    %1233 = vmatpush1.xpose.msra.mxu0 0.0
    %1234 = vmatprep.subr.mxu0 0.0
    %1235 = vmatpush1.xpose.msra.mxu0 0.0
    %1236 = vmatprep.subr.mxu0 0.0
    %1237 = vmatpush1.xpose.msra.mxu0 0.0
    %1238 = vmatprep.subr.mxu0 0.0
    %1239 = vmatpush1.xpose.msra.mxu0 0.0
    %1240 = vmatprep.subr.mxu0 0.0
    %1241 = vmatpush1.xpose.msra.mxu0 0.0
    %1242 = vmatprep.subr.mxu0 0.0
    %1243 = vmatpush1.xpose.msra.mxu0 0.0
    %1244 = vmatprep.subr.mxu0 0.0
    %1245 = vmatpush1.xpose.msra.mxu0 0.0
    %1246 = vmatprep.subr.mxu0 0.0
    %1247 = vmatpush1.xpose.msra.mxu0 0.0
    %1248 = vmatprep.subr.mxu0 0.0
    %1249 = vmatpush1.xpose.msra.mxu0 0.0
    %1250 = vmatprep.subr.mxu0 0.0
    %1251 = vmatpush1.xpose.msra.mxu0 0.0
    %1252 = vmatprep.subr.mxu0 0.0
    %1253 = vmatpush1.xpose.msra.mxu0 0.0
    %1254 = vmatprep.subr.mxu0 0.0
    %1255 = vmatpush1.xpose.msra.mxu0 0.0
    %1256 = vmatprep.subr.mxu0 0.0
    %1257 = vmatpush1.xpose.msra.mxu0 0.0
    %1258 = vmatprep.subr.mxu0 0.0
    %1259 = vmatpush1.xpose.msra.mxu0 0.0
    %1260 = vmatprep.subr.mxu0 0.0
    %1261 = vmatpush1.xpose.msra.mxu0 0.0
    %1262 = vmatprep.subr.mxu0 0.0
    %1263 = vmatpush1.xpose.msra.mxu0 %v1230
    %1264 = vmatprep.subr.mxu0 0.0
    %1265 = vmatpush2.xpose.msra.mxu0 0.0
    %1266 = vmatprep.subr.mxu0 0.0
    %1267 = vmatpush2.xpose.msra.mxu0 0.0
    %1268 = vmatprep.subr.mxu0 0.0
    %1269 = vmatpush2.xpose.msra.mxu0 0.0
    %1270 = vmatprep.subr.mxu0 0.0
    %1271 = vmatpush2.xpose.msra.mxu0 0.0
    %1272 = vmatprep.subr.mxu0 0.0
    %1273 = vmatpush2.xpose.msra.mxu0 0.0
    %1274 = vmatprep.subr.mxu0 0.0
    %1275 = vmatpush2.xpose.msra.mxu0 0.0
    %1276 = vmatprep.subr.mxu0 0.0
    %1277 = vmatpush2.xpose.msra.mxu0 0.0
    %1278 = vmatprep.subr.mxu0 0.0
    %1279 = vmatpush2.xpose.msra.mxu0 0.0
    %1280 = vmatprep.subr.mxu0 0.0
    %1281 = vmatpush2.xpose.msra.mxu0 0.0
    %1282 = vmatprep.subr.mxu0 0.0
    %1283 = vmatpush2.xpose.msra.mxu0 0.0
    %1284 = vmatprep.subr.mxu0 0.0
    %1285 = vmatpush2.xpose.msra.mxu0 0.0
    %1286 = vmatprep.subr.mxu0 0.0
    %1287 = vmatpush2.xpose.msra.mxu0 0.0
    %1288 = vmatprep.subr.mxu0 0.0
    %1289 = vmatpush2.xpose.msra.mxu0 0.0
    %1290 = vmatprep.subr.mxu0 0.0
    %1291 = vmatpush2.xpose.msra.mxu0 0.0
    %1292 = vmatprep.subr.mxu0 0.0
    %1293 = vmatpush2.xpose.msra.mxu0 0.0
    %1294 = vmatprep.subr.mxu0 0.0
    %1295 = vmatpush2.xpose.msra.mxu0 0.0
    %1296 = vmatprep.mubr.f32.mxu0 0.0
    %1297 = vmatmul.mubr.f32.gmra.mxu0 %v1228
    %v1298 = vpop.f32.mrf.mxu0
    %v1299 = vadd.f32 0.0, %v1298
    %v1300 = vpop.f32.mrf.mxu0
    %1301 = vdwg.mxu0
    %v1302 = vsel %vm818, %v1221, -inf
    %1303 = vmax.xlane.f32.xlu0 %v1302
    %v1304 = vpop.xlane.xlu0 %1303
    %v1305 = vsel %vm818, %v1299, -inf
    %1306 = vmax.xlane.f32.xlu0 %v1305
    %v1307 = vpop.xlane.xlu0 %1306
    %v1308 = vsub.f32 %v1221, %v1304
    %v1309 = vsub.f32 %v1299, %v1307
    %v1310 = vmul.f32 %v1308, 1.442695
    %v1311 = vpow.pop %v1310
    %v1312 = vmul.f32 %v1309, 1.442695
    %v1313 = vpow.pop %v1312
    %v1314 = vsel %vm818, %v1311, 0.0
    %1315 = vadd.xlane.f32.xlu0 %v1314
    %v1316 = vpop.xlane.xlu0 %1315
    %v1317 = vsel %vm818, %v1313, 0.0
    %1318 = vadd.xlane.f32.xlu0 %v1317
    %v1319 = vpop.xlane.xlu0 %1318
    %v1320 = vrcp.pop %v1316
    %v1321 = vmul.f32 1.0, %v1320
    %v1322 = vrcp.pop %v1319
    %v1323 = vmul.f32 1.0, %v1322
    %v1324 = vmul.f32 %v1311, %v1321
    %v1325 = vmul.f32 %v1313, %v1323
    %1326 = vrot.lane.b32.xlu0 %v803, 56
    %v1327 = vpop.permute.xlu0 %1326
    %v1330 = vsel %vm818, %v1324, 0
    %1332 = vmatprep.subr.mxu0 0.0
    %1333 = vmatpush1.msra.mxu0 0.0
    %1334 = vmatprep.subr.mxu0 0.0
    %1335 = vmatpush1.msra.mxu0 0.0
    %1336 = vmatprep.subr.mxu0 0.0
    %1337 = vmatpush1.msra.mxu0 0.0
    %1338 = vmatprep.subr.mxu0 0.0
    %1339 = vmatpush1.msra.mxu0 0.0
    %1340 = vmatprep.subr.mxu0 0.0
    %1341 = vmatpush1.msra.mxu0 0.0
    %1342 = vmatprep.subr.mxu0 0.0
    %1343 = vmatpush1.msra.mxu0 0.0
    %1344 = vmatprep.subr.mxu0 0.0
    %1345 = vmatpush1.msra.mxu0 0.0
    %1346 = vmatprep.subr.mxu0 0.0
    %1347 = vmatpush1.msra.mxu0 0.0
    %1348 = vmatprep.subr.mxu0 0.0
    %1349 = vmatpush1.msra.mxu0 0.0
    %1350 = vmatprep.subr.mxu0 0.0
    %1351 = vmatpush1.msra.mxu0 0.0
    %1352 = vmatprep.subr.mxu0 0.0
    %1353 = vmatpush1.msra.mxu0 0.0
    %1354 = vmatprep.subr.mxu0 0.0
    %1355 = vmatpush1.msra.mxu0 0.0
    %1356 = vmatprep.subr.mxu0 0.0
    %1357 = vmatpush1.msra.mxu0 0.0
    %1358 = vmatprep.subr.mxu0 0.0
    %1359 = vmatpush1.msra.mxu0 0.0
    %1360 = vmatprep.subr.mxu0 0.0
    %1361 = vmatpush1.msra.mxu0 0.0
    %1362 = vmatprep.subr.mxu0 0.0
    %1363 = vmatpush1.msra.mxu0 %v1327
    %1364 = vmatprep.subr.mxu0 0.0
    %1365 = vmatpush2.msra.mxu0 0.0
    %1366 = vmatprep.subr.mxu0 0.0
    %1367 = vmatpush2.msra.mxu0 0.0
    %1368 = vmatprep.subr.mxu0 0.0
    %1369 = vmatpush2.msra.mxu0 0.0
    %1370 = vmatprep.subr.mxu0 0.0
    %1371 = vmatpush2.msra.mxu0 0.0
    %1372 = vmatprep.subr.mxu0 0.0
    %1373 = vmatpush2.msra.mxu0 0.0
    %1374 = vmatprep.subr.mxu0 0.0
    %1375 = vmatpush2.msra.mxu0 0.0
    %1376 = vmatprep.subr.mxu0 0.0
    %1377 = vmatpush2.msra.mxu0 0.0
    %1378 = vmatprep.subr.mxu0 0.0
    %1379 = vmatpush2.msra.mxu0 0.0
    %1380 = vmatprep.subr.mxu0 0.0
    %1381 = vmatpush2.msra.mxu0 0.0
    %1382 = vmatprep.subr.mxu0 0.0
    %1383 = vmatpush2.msra.mxu0 0.0
    %1384 = vmatprep.subr.mxu0 0.0
    %1385 = vmatpush2.msra.mxu0 0.0
    %1386 = vmatprep.subr.mxu0 0.0
    %1387 = vmatpush2.msra.mxu0 0.0
    %1388 = vmatprep.subr.mxu0 0.0
    %1389 = vmatpush2.msra.mxu0 0.0
    %1390 = vmatprep.subr.mxu0 0.0
    %1391 = vmatpush2.msra.mxu0 0.0
    %1392 = vmatprep.subr.mxu0 0.0
    %1393 = vmatpush2.msra.mxu0 0.0
    %1394 = vmatprep.subr.mxu0 0.0
    %1395 = vmatpush2.msra.mxu0 0.0
    %1396 = vmatprep.mubr.f32.mxu0 0.0
    %1397 = vmatmul.mubr.f32.gmra.mxu0 %v1330
    %v1398 = vpop.f32.mrf.mxu0
    %v1399 = vadd.f32 0.0, %v1398
    %v1400 = vpop.f32.mrf.mxu0
    %1401 = vdwg.mxu0
    %1402 = vrot.lane.b32.xlu0 %v808, 56
    %v1403 = vpop.permute.xlu0 %1402
    %v1406 = vsel %vm818, %v1325, 0
    %1408 = vmatprep.subr.mxu0 0.0
    %1409 = vmatpush1.msra.mxu0 0.0
    %1410 = vmatprep.subr.mxu0 0.0
    %1411 = vmatpush1.msra.mxu0 0.0
    %1412 = vmatprep.subr.mxu0 0.0
    %1413 = vmatpush1.msra.mxu0 0.0
    %1414 = vmatprep.subr.mxu0 0.0
    %1415 = vmatpush1.msra.mxu0 0.0
    %1416 = vmatprep.subr.mxu0 0.0
    %1417 = vmatpush1.msra.mxu0 0.0
    %1418 = vmatprep.subr.mxu0 0.0
    %1419 = vmatpush1.msra.mxu0 0.0
    %1420 = vmatprep.subr.mxu0 0.0
    %1421 = vmatpush1.msra.mxu0 0.0
    %1422 = vmatprep.subr.mxu0 0.0
    %1423 = vmatpush1.msra.mxu0 0.0
    %1424 = vmatprep.subr.mxu0 0.0
    %1425 = vmatpush1.msra.mxu0 0.0
    %1426 = vmatprep.subr.mxu0 0.0
    %1427 = vmatpush1.msra.mxu0 0.0
    %1428 = vmatprep.subr.mxu0 0.0
    %1429 = vmatpush1.msra.mxu0 0.0
    %1430 = vmatprep.subr.mxu0 0.0
    %1431 = vmatpush1.msra.mxu0 0.0
    %1432 = vmatprep.subr.mxu0 0.0
    %1433 = vmatpush1.msra.mxu0 0.0
    %1434 = vmatprep.subr.mxu0 0.0
    %1435 = vmatpush1.msra.mxu0 0.0
    %1436 = vmatprep.subr.mxu0 0.0
    %1437 = vmatpush1.msra.mxu0 0.0
    %1438 = vmatprep.subr.mxu0 0.0
    %1439 = vmatpush1.msra.mxu0 %v1403
    %1440 = vmatprep.subr.mxu0 0.0
    %1441 = vmatpush2.msra.mxu0 0.0
    %1442 = vmatprep.subr.mxu0 0.0
    %1443 = vmatpush2.msra.mxu0 0.0
    %1444 = vmatprep.subr.mxu0 0.0
    %1445 = vmatpush2.msra.mxu0 0.0
    %1446 = vmatprep.subr.mxu0 0.0
    %1447 = vmatpush2.msra.mxu0 0.0
    %1448 = vmatprep.subr.mxu0 0.0
    %1449 = vmatpush2.msra.mxu0 0.0
    %1450 = vmatprep.subr.mxu0 0.0
    %1451 = vmatpush2.msra.mxu0 0.0
    %1452 = vmatprep.subr.mxu0 0.0
    %1453 = vmatpush2.msra.mxu0 0.0
    %1454 = vmatprep.subr.mxu0 0.0
    %1455 = vmatpush2.msra.mxu0 0.0
    %1456 = vmatprep.subr.mxu0 0.0
    %1457 = vmatpush2.msra.mxu0 0.0
    %1458 = vmatprep.subr.mxu0 0.0
    %1459 = vmatpush2.msra.mxu0 0.0
    %1460 = vmatprep.subr.mxu0 0.0
    %1461 = vmatpush2.msra.mxu0 0.0
    %1462 = vmatprep.subr.mxu0 0.0
    %1463 = vmatpush2.msra.mxu0 0.0
    %1464 = vmatprep.subr.mxu0 0.0
    %1465 = vmatpush2.msra.mxu0 0.0
    %1466 = vmatprep.subr.mxu0 0.0
    %1467 = vmatpush2.msra.mxu0 0.0
    %1468 = vmatprep.subr.mxu0 0.0
    %1469 = vmatpush2.msra.mxu0 0.0
    %1470 = vmatprep.subr.mxu0 0.0
    %1471 = vmatpush2.msra.mxu0 0.0
    %1472 = vmatprep.mubr.f32.mxu0 0.0
    %1473 = vmatmul.mubr.f32.gmra.mxu0 %v1406
    %v1474 = vpop.f32.mrf.mxu0
    %v1475 = vadd.f32 0.0, %v1474
    %v1476 = vpop.f32.mrf.mxu0
    %1477 = vdwg.mxu0
    %v1479 = vsel %vm818, %v1399, 0
    %v1482 = vsel %vm818, %v1475, 0
    %1484 = vmatprep.subr.mxu0 0.0
    %1485 = vmatpush1.msra.mxu0 0.0
    %1486 = vmatprep.subr.mxu0 0.0
    %1487 = vmatpush1.msra.mxu0 0.0
    %1488 = vmatprep.subr.mxu0 0.0
    %1489 = vmatpush1.msra.mxu0 0.0
    %1490 = vmatprep.subr.mxu0 0.0
    %1491 = vmatpush1.msra.mxu0 0.0
    %1492 = vmatprep.subr.mxu0 0.0
    %1493 = vmatpush1.msra.mxu0 0.0
    %1494 = vmatprep.subr.mxu0 0.0
    %1495 = vmatpush1.msra.mxu0 0.0
    %1496 = vmatprep.subr.mxu0 0.0
    %1497 = vmatpush1.msra.mxu0 0.0
    %1498 = vmatprep.subr.mxu0 0.0
    %1499 = vmatpush1.msra.mxu0 0.0
    %1500 = vmatprep.subr.mxu0 0.0
    %1501 = vmatpush1.msra.mxu0 0.0
    %1502 = vmatprep.subr.mxu0 0.0
    %1503 = vmatpush1.msra.mxu0 0.0
    %1504 = vmatprep.subr.mxu0 0.0
    %1505 = vmatpush1.msra.mxu0 0.0
    %1506 = vmatprep.subr.mxu0 0.0
    %1507 = vmatpush1.msra.mxu0 0.0
    %1508 = vmatprep.subr.mxu0 0.0
    %1509 = vmatpush1.msra.mxu0 0.0
    %1510 = vmatprep.subr.mxu0 0.0
    %1511 = vmatpush1.msra.mxu0 0.0
    %1512 = vmatprep.subr.mxu0 0.0
    %1513 = vmatpush1.msra.mxu0 0.0
    %1514 = vmatprep.subr.mxu0 0.0
    %1515 = vmatpush1.msra.mxu0 %v812
    %1516 = vmatprep.subr.mxu0 0.0
    %1517 = vmatpush2.msra.mxu0 0.0
    %1518 = vmatprep.subr.mxu0 0.0
    %1519 = vmatpush2.msra.mxu0 0.0
    %1520 = vmatprep.subr.mxu0 0.0
    %1521 = vmatpush2.msra.mxu0 0.0
    %1522 = vmatprep.subr.mxu0 0.0
    %1523 = vmatpush2.msra.mxu0 0.0
    %1524 = vmatprep.subr.mxu0 0.0
    %1525 = vmatpush2.msra.mxu0 0.0
    %1526 = vmatprep.subr.mxu0 0.0
    %1527 = vmatpush2.msra.mxu0 0.0
    %1528 = vmatprep.subr.mxu0 0.0
    %1529 = vmatpush2.msra.mxu0 0.0
    %1530 = vmatprep.subr.mxu0 0.0
    %1531 = vmatpush2.msra.mxu0 0.0
    %1532 = vmatprep.subr.mxu0 0.0
    %1533 = vmatpush2.msra.mxu0 0.0
    %1534 = vmatprep.subr.mxu0 0.0
    %1535 = vmatpush2.msra.mxu0 0.0
    %1536 = vmatprep.subr.mxu0 0.0
    %1537 = vmatpush2.msra.mxu0 0.0
    %1538 = vmatprep.subr.mxu0 0.0
    %1539 = vmatpush2.msra.mxu0 0.0
    %1540 = vmatprep.subr.mxu0 0.0
    %1541 = vmatpush2.msra.mxu0 0.0
    %1542 = vmatprep.subr.mxu0 0.0
    %1543 = vmatpush2.msra.mxu0 0.0
    %1544 = vmatprep.subr.mxu0 0.0
    %1545 = vmatpush2.msra.mxu0 0.0
    %1546 = vmatprep.subr.mxu0 0.0
    %1547 = vmatpush2.msra.mxu0 0.0
    %1548 = vmatprep.mubr.f32.mxu0 0.0
    %1549 = vmatmul.mubr.f32.gmra.mxu0 %v1479
    %v1550 = vpop.f32.mrf.mxu0
    %v1551 = vadd.f32 0.0, %v1550
    %v1552 = vpop.f32.mrf.mxu0
    %1553 = vmatprep.mubr.f32.mxu0 0.0
    %1554 = vmatmul.mubr.f32.gmra.mxu0 %v1482
    %v1555 = vpop.f32.mrf.mxu0
    %v1556 = vadd.f32 0.0, %v1555
    %v1557 = vpop.f32.mrf.mxu0
    %1558 = vdwg.mxu0
    %v1560 = vsel %vm818, %v1067, 0
    %v1563 = vsel %vm818, %v1143, 0
    %1565 = vmatprep.subr.mxu0 0.0
    %1566 = vmatpush1.msra.mxu0 0.0
    %1567 = vmatprep.subr.mxu0 0.0
    %1568 = vmatpush1.msra.mxu0 0.0
    %1569 = vmatprep.subr.mxu0 0.0
    %1570 = vmatpush1.msra.mxu0 0.0
    %1571 = vmatprep.subr.mxu0 0.0
    %1572 = vmatpush1.msra.mxu0 0.0
    %1573 = vmatprep.subr.mxu0 0.0
    %1574 = vmatpush1.msra.mxu0 0.0
    %1575 = vmatprep.subr.mxu0 0.0
    %1576 = vmatpush1.msra.mxu0 0.0
    %1577 = vmatprep.subr.mxu0 0.0
    %1578 = vmatpush1.msra.mxu0 0.0
    %1579 = vmatprep.subr.mxu0 0.0
    %1580 = vmatpush1.msra.mxu0 0.0
    %1581 = vmatprep.subr.mxu0 0.0
    %1582 = vmatpush1.msra.mxu0 0.0
    %1583 = vmatprep.subr.mxu0 0.0
    %1584 = vmatpush1.msra.mxu0 0.0
    %1585 = vmatprep.subr.mxu0 0.0
    %1586 = vmatpush1.msra.mxu0 0.0
    %1587 = vmatprep.subr.mxu0 0.0
    %1588 = vmatpush1.msra.mxu0 0.0
    %1589 = vmatprep.subr.mxu0 0.0
    %1590 = vmatpush1.msra.mxu0 0.0
    %1591 = vmatprep.subr.mxu0 0.0
    %1592 = vmatpush1.msra.mxu0 0.0
    %1593 = vmatprep.subr.mxu0 0.0
    %1594 = vmatpush1.msra.mxu0 0.0
    %1595 = vmatprep.subr.mxu0 0.0
    %1596 = vmatpush1.msra.mxu0 %v811
    %1597 = vmatprep.subr.mxu0 0.0
    %1598 = vmatpush2.msra.mxu0 0.0
    %1599 = vmatprep.subr.mxu0 0.0
    %1600 = vmatpush2.msra.mxu0 0.0
    %1601 = vmatprep.subr.mxu0 0.0
    %1602 = vmatpush2.msra.mxu0 0.0
    %1603 = vmatprep.subr.mxu0 0.0
    %1604 = vmatpush2.msra.mxu0 0.0
    %1605 = vmatprep.subr.mxu0 0.0
    %1606 = vmatpush2.msra.mxu0 0.0
    %1607 = vmatprep.subr.mxu0 0.0
    %1608 = vmatpush2.msra.mxu0 0.0
    %1609 = vmatprep.subr.mxu0 0.0
    %1610 = vmatpush2.msra.mxu0 0.0
    %1611 = vmatprep.subr.mxu0 0.0
    %1612 = vmatpush2.msra.mxu0 0.0
    %1613 = vmatprep.subr.mxu0 0.0
    %1614 = vmatpush2.msra.mxu0 0.0
    %1615 = vmatprep.subr.mxu0 0.0
    %1616 = vmatpush2.msra.mxu0 0.0
    %1617 = vmatprep.subr.mxu0 0.0
    %1618 = vmatpush2.msra.mxu0 0.0
    %1619 = vmatprep.subr.mxu0 0.0
    %1620 = vmatpush2.msra.mxu0 0.0
    %1621 = vmatprep.subr.mxu0 0.0
    %1622 = vmatpush2.msra.mxu0 0.0
    %1623 = vmatprep.subr.mxu0 0.0
    %1624 = vmatpush2.msra.mxu0 0.0
    %1625 = vmatprep.subr.mxu0 0.0
    %1626 = vmatpush2.msra.mxu0 0.0
    %1627 = vmatprep.subr.mxu0 0.0
    %1628 = vmatpush2.msra.mxu0 0.0
    %1629 = vmatprep.mubr.f32.mxu0 0.0
    %1630 = vmatmul.mubr.f32.gmra.mxu0 %v1560
    %v1631 = vpop.f32.mrf.mxu0
    %v1632 = vadd.f32 %v1551, %v1631
    %v1633 = vpop.f32.mrf.mxu0
    %1634 = vmatprep.mubr.f32.mxu0 0.0
    %1635 = vmatmul.mubr.f32.gmra.mxu0 %v1563
    %v1636 = vpop.f32.mrf.mxu0
    %v1637 = vadd.f32 %v1556, %v1636
    %v1638 = vpop.f32.mrf.mxu0
    %1639 = vdwg.mxu0
    %1640 = vrot.lane.b32.xlu0 %v803, 112
    %v1641 = vpop.permute.xlu0 %1640
    %1642 = vrot.lane.b32.xlu0 %v803, 80
    %v1643 = vpop.permute.xlu0 %1642
    %v1644 = vsel %vm818, %v1641, 0
    %v1646 = vsel %vm818, %v1643, 0
    %1648 = vmatprep.subr.mxu0 0.0
    %1649 = vmatpush1.xpose.msra.mxu0 0.0
    %1650 = vmatprep.subr.mxu0 0.0
    %1651 = vmatpush1.xpose.msra.mxu0 0.0
    %1652 = vmatprep.subr.mxu0 0.0
    %1653 = vmatpush1.xpose.msra.mxu0 0.0
    %1654 = vmatprep.subr.mxu0 0.0
    %1655 = vmatpush1.xpose.msra.mxu0 0.0
    %1656 = vmatprep.subr.mxu0 0.0
    %1657 = vmatpush1.xpose.msra.mxu0 0.0
    %1658 = vmatprep.subr.mxu0 0.0
    %1659 = vmatpush1.xpose.msra.mxu0 0.0
    %1660 = vmatprep.subr.mxu0 0.0
    %1661 = vmatpush1.xpose.msra.mxu0 0.0
    %1662 = vmatprep.subr.mxu0 0.0
    %1663 = vmatpush1.xpose.msra.mxu0 0.0
    %1664 = vmatprep.subr.mxu0 0.0
    %1665 = vmatpush1.xpose.msra.mxu0 0.0
    %1666 = vmatprep.subr.mxu0 0.0
    %1667 = vmatpush1.xpose.msra.mxu0 0.0
    %1668 = vmatprep.subr.mxu0 0.0
    %1669 = vmatpush1.xpose.msra.mxu0 0.0
    %1670 = vmatprep.subr.mxu0 0.0
    %1671 = vmatpush1.xpose.msra.mxu0 0.0
    %1672 = vmatprep.subr.mxu0 0.0
    %1673 = vmatpush1.xpose.msra.mxu0 0.0
    %1674 = vmatprep.subr.mxu0 0.0
    %1675 = vmatpush1.xpose.msra.mxu0 0.0
    %1676 = vmatprep.subr.mxu0 0.0
    %1677 = vmatpush1.xpose.msra.mxu0 0.0
    %1678 = vmatprep.subr.mxu0 0.0
    %1679 = vmatpush1.xpose.msra.mxu0 %v1646
    %1680 = vmatprep.subr.mxu0 0.0
    %1681 = vmatpush2.xpose.msra.mxu0 0.0
    %1682 = vmatprep.subr.mxu0 0.0
    %1683 = vmatpush2.xpose.msra.mxu0 0.0
    %1684 = vmatprep.subr.mxu0 0.0
    %1685 = vmatpush2.xpose.msra.mxu0 0.0
    %1686 = vmatprep.subr.mxu0 0.0
    %1687 = vmatpush2.xpose.msra.mxu0 0.0
    %1688 = vmatprep.subr.mxu0 0.0
    %1689 = vmatpush2.xpose.msra.mxu0 0.0
    %1690 = vmatprep.subr.mxu0 0.0
    %1691 = vmatpush2.xpose.msra.mxu0 0.0
    %1692 = vmatprep.subr.mxu0 0.0
    %1693 = vmatpush2.xpose.msra.mxu0 0.0
    %1694 = vmatprep.subr.mxu0 0.0
    %1695 = vmatpush2.xpose.msra.mxu0 0.0
    %1696 = vmatprep.subr.mxu0 0.0
    %1697 = vmatpush2.xpose.msra.mxu0 0.0
    %1698 = vmatprep.subr.mxu0 0.0
    %1699 = vmatpush2.xpose.msra.mxu0 0.0
    %1700 = vmatprep.subr.mxu0 0.0
    %1701 = vmatpush2.xpose.msra.mxu0 0.0
    %1702 = vmatprep.subr.mxu0 0.0
    %1703 = vmatpush2.xpose.msra.mxu0 0.0
    %1704 = vmatprep.subr.mxu0 0.0
    %1705 = vmatpush2.xpose.msra.mxu0 0.0
    %1706 = vmatprep.subr.mxu0 0.0
    %1707 = vmatpush2.xpose.msra.mxu0 0.0
    %1708 = vmatprep.subr.mxu0 0.0
    %1709 = vmatpush2.xpose.msra.mxu0 0.0
    %1710 = vmatprep.subr.mxu0 0.0
    %1711 = vmatpush2.xpose.msra.mxu0 0.0
    %1712 = vmatprep.mubr.f32.mxu0 0.0
    %1713 = vmatmul.mubr.f32.gmra.mxu0 %v1644
    %v1714 = vpop.f32.mrf.mxu0
    %v1715 = vadd.f32 0.0, %v1714
    %v1716 = vpop.f32.mrf.mxu0
    %1717 = vdwg.mxu0
    %1718 = vrot.lane.b32.xlu0 %v808, 112
    %v1719 = vpop.permute.xlu0 %1718
    %1720 = vrot.lane.b32.xlu0 %v808, 80
    %v1721 = vpop.permute.xlu0 %1720
    %v1722 = vsel %vm818, %v1719, 0
    %v1724 = vsel %vm818, %v1721, 0
    %1726 = vmatprep.subr.mxu0 0.0
    %1727 = vmatpush1.xpose.msra.mxu0 0.0
    %1728 = vmatprep.subr.mxu0 0.0
    %1729 = vmatpush1.xpose.msra.mxu0 0.0
    %1730 = vmatprep.subr.mxu0 0.0
    %1731 = vmatpush1.xpose.msra.mxu0 0.0
    %1732 = vmatprep.subr.mxu0 0.0
    %1733 = vmatpush1.xpose.msra.mxu0 0.0
    %1734 = vmatprep.subr.mxu0 0.0
    %1735 = vmatpush1.xpose.msra.mxu0 0.0
    %1736 = vmatprep.subr.mxu0 0.0
    %1737 = vmatpush1.xpose.msra.mxu0 0.0
    %1738 = vmatprep.subr.mxu0 0.0
    %1739 = vmatpush1.xpose.msra.mxu0 0.0
    %1740 = vmatprep.subr.mxu0 0.0
    %1741 = vmatpush1.xpose.msra.mxu0 0.0
    %1742 = vmatprep.subr.mxu0 0.0
    %1743 = vmatpush1.xpose.msra.mxu0 0.0
    %1744 = vmatprep.subr.mxu0 0.0
    %1745 = vmatpush1.xpose.msra.mxu0 0.0
    %1746 = vmatprep.subr.mxu0 0.0
    %1747 = vmatpush1.xpose.msra.mxu0 0.0
    %1748 = vmatprep.subr.mxu0 0.0
    %1749 = vmatpush1.xpose.msra.mxu0 0.0
    %1750 = vmatprep.subr.mxu0 0.0
    %1751 = vmatpush1.xpose.msra.mxu0 0.0
    %1752 = vmatprep.subr.mxu0 0.0
    %1753 = vmatpush1.xpose.msra.mxu0 0.0
    %1754 = vmatprep.subr.mxu0 0.0
    %1755 = vmatpush1.xpose.msra.mxu0 0.0
    %1756 = vmatprep.subr.mxu0 0.0
    %1757 = vmatpush1.xpose.msra.mxu0 %v1724
    %1758 = vmatprep.subr.mxu0 0.0
    %1759 = vmatpush2.xpose.msra.mxu0 0.0
    %1760 = vmatprep.subr.mxu0 0.0
    %1761 = vmatpush2.xpose.msra.mxu0 0.0
    %1762 = vmatprep.subr.mxu0 0.0
    %1763 = vmatpush2.xpose.msra.mxu0 0.0
    %1764 = vmatprep.subr.mxu0 0.0
    %1765 = vmatpush2.xpose.msra.mxu0 0.0
    %1766 = vmatprep.subr.mxu0 0.0
    %1767 = vmatpush2.xpose.msra.mxu0 0.0
    %1768 = vmatprep.subr.mxu0 0.0
    %1769 = vmatpush2.xpose.msra.mxu0 0.0
    %1770 = vmatprep.subr.mxu0 0.0
    %1771 = vmatpush2.xpose.msra.mxu0 0.0
    %1772 = vmatprep.subr.mxu0 0.0
    %1773 = vmatpush2.xpose.msra.mxu0 0.0
    %1774 = vmatprep.subr.mxu0 0.0
    %1775 = vmatpush2.xpose.msra.mxu0 0.0
    %1776 = vmatprep.subr.mxu0 0.0
    %1777 = vmatpush2.xpose.msra.mxu0 0.0
    %1778 = vmatprep.subr.mxu0 0.0
    %1779 = vmatpush2.xpose.msra.mxu0 0.0
    %1780 = vmatprep.subr.mxu0 0.0
    %1781 = vmatpush2.xpose.msra.mxu0 0.0
    %1782 = vmatprep.subr.mxu0 0.0
    %1783 = vmatpush2.xpose.msra.mxu0 0.0
    %1784 = vmatprep.subr.mxu0 0.0
    %1785 = vmatpush2.xpose.msra.mxu0 0.0
    %1786 = vmatprep.subr.mxu0 0.0
    %1787 = vmatpush2.xpose.msra.mxu0 0.0
    %1788 = vmatprep.subr.mxu0 0.0
    %1789 = vmatpush2.xpose.msra.mxu0 0.0
    %1790 = vmatprep.mubr.f32.mxu0 0.0
    %1791 = vmatmul.mubr.f32.gmra.mxu0 %v1722
    %v1792 = vpop.f32.mrf.mxu0
    %v1793 = vadd.f32 0.0, %v1792
    %v1794 = vpop.f32.mrf.mxu0
    %1795 = vdwg.mxu0
    %v1796 = vsel %vm818, %v1715, -inf
    %1797 = vmax.xlane.f32.xlu0 %v1796
    %v1798 = vpop.xlane.xlu0 %1797
    %v1799 = vsel %vm818, %v1793, -inf
    %1800 = vmax.xlane.f32.xlu0 %v1799
    %v1801 = vpop.xlane.xlu0 %1800
    %v1802 = vsub.f32 %v1715, %v1798
    %v1803 = vsub.f32 %v1793, %v1801
    %v1804 = vmul.f32 %v1802, 1.442695
    %v1805 = vpow.pop %v1804
    %v1806 = vmul.f32 %v1803, 1.442695
    %v1807 = vpow.pop %v1806
    %v1808 = vsel %vm818, %v1805, 0.0
    %1809 = vadd.xlane.f32.xlu0 %v1808
    %v1810 = vpop.xlane.xlu0 %1809
    %v1811 = vsel %vm818, %v1807, 0.0
    %1812 = vadd.xlane.f32.xlu0 %v1811
    %v1813 = vpop.xlane.xlu0 %1812
    %v1814 = vrcp.pop %v1810
    %v1815 = vmul.f32 1.0, %v1814
    %v1816 = vrcp.pop %v1813
    %v1817 = vmul.f32 1.0, %v1816
    %v1818 = vmul.f32 %v1805, %v1815
    %v1819 = vmul.f32 %v1807, %v1817
    %1820 = vrot.lane.b32.xlu0 %v803, 48
    %v1821 = vpop.permute.xlu0 %1820
    %v1824 = vsel %vm818, %v1818, 0
    %1826 = vmatprep.subr.mxu0 0.0
    %1827 = vmatpush1.msra.mxu0 0.0
    %1828 = vmatprep.subr.mxu0 0.0
    %1829 = vmatpush1.msra.mxu0 0.0
    %1830 = vmatprep.subr.mxu0 0.0
    %1831 = vmatpush1.msra.mxu0 0.0
    %1832 = vmatprep.subr.mxu0 0.0
    %1833 = vmatpush1.msra.mxu0 0.0
    %1834 = vmatprep.subr.mxu0 0.0
    %1835 = vmatpush1.msra.mxu0 0.0
    %1836 = vmatprep.subr.mxu0 0.0
    %1837 = vmatpush1.msra.mxu0 0.0
    %1838 = vmatprep.subr.mxu0 0.0
    %1839 = vmatpush1.msra.mxu0 0.0
    %1840 = vmatprep.subr.mxu0 0.0
    %1841 = vmatpush1.msra.mxu0 0.0
    %1842 = vmatprep.subr.mxu0 0.0
    %1843 = vmatpush1.msra.mxu0 0.0
    %1844 = vmatprep.subr.mxu0 0.0
    %1845 = vmatpush1.msra.mxu0 0.0
    %1846 = vmatprep.subr.mxu0 0.0
    %1847 = vmatpush1.msra.mxu0 0.0
    %1848 = vmatprep.subr.mxu0 0.0
    %1849 = vmatpush1.msra.mxu0 0.0
    %1850 = vmatprep.subr.mxu0 0.0
    %1851 = vmatpush1.msra.mxu0 0.0
    %1852 = vmatprep.subr.mxu0 0.0
    %1853 = vmatpush1.msra.mxu0 0.0
    %1854 = vmatprep.subr.mxu0 0.0
    %1855 = vmatpush1.msra.mxu0 0.0
    %1856 = vmatprep.subr.mxu0 0.0
    %1857 = vmatpush1.msra.mxu0 %v1821
    %1858 = vmatprep.subr.mxu0 0.0
    %1859 = vmatpush2.msra.mxu0 0.0
    %1860 = vmatprep.subr.mxu0 0.0
    %1861 = vmatpush2.msra.mxu0 0.0
    %1862 = vmatprep.subr.mxu0 0.0
    %1863 = vmatpush2.msra.mxu0 0.0
    %1864 = vmatprep.subr.mxu0 0.0
    %1865 = vmatpush2.msra.mxu0 0.0
    %1866 = vmatprep.subr.mxu0 0.0
    %1867 = vmatpush2.msra.mxu0 0.0
    %1868 = vmatprep.subr.mxu0 0.0
    %1869 = vmatpush2.msra.mxu0 0.0
    %1870 = vmatprep.subr.mxu0 0.0
    %1871 = vmatpush2.msra.mxu0 0.0
    %1872 = vmatprep.subr.mxu0 0.0
    %1873 = vmatpush2.msra.mxu0 0.0
    %1874 = vmatprep.subr.mxu0 0.0
    %1875 = vmatpush2.msra.mxu0 0.0
    %1876 = vmatprep.subr.mxu0 0.0
    %1877 = vmatpush2.msra.mxu0 0.0
    %1878 = vmatprep.subr.mxu0 0.0
    %1879 = vmatpush2.msra.mxu0 0.0
    %1880 = vmatprep.subr.mxu0 0.0
    %1881 = vmatpush2.msra.mxu0 0.0
    %1882 = vmatprep.subr.mxu0 0.0
    %1883 = vmatpush2.msra.mxu0 0.0
    %1884 = vmatprep.subr.mxu0 0.0
    %1885 = vmatpush2.msra.mxu0 0.0
    %1886 = vmatprep.subr.mxu0 0.0
    %1887 = vmatpush2.msra.mxu0 0.0
    %1888 = vmatprep.subr.mxu0 0.0
    %1889 = vmatpush2.msra.mxu0 0.0
    %1890 = vmatprep.mubr.f32.mxu0 0.0
    %1891 = vmatmul.mubr.f32.gmra.mxu0 %v1824
    %v1892 = vpop.f32.mrf.mxu0
    %v1893 = vadd.f32 0.0, %v1892
    %v1894 = vpop.f32.mrf.mxu0
    %1895 = vdwg.mxu0
    %1896 = vrot.lane.b32.xlu0 %v808, 48
    %v1897 = vpop.permute.xlu0 %1896
    %v1900 = vsel %vm818, %v1819, 0
    %1902 = vmatprep.subr.mxu0 0.0
    %1903 = vmatpush1.msra.mxu0 0.0
    %1904 = vmatprep.subr.mxu0 0.0
    %1905 = vmatpush1.msra.mxu0 0.0
    %1906 = vmatprep.subr.mxu0 0.0
    %1907 = vmatpush1.msra.mxu0 0.0
    %1908 = vmatprep.subr.mxu0 0.0
    %1909 = vmatpush1.msra.mxu0 0.0
    %1910 = vmatprep.subr.mxu0 0.0
    %1911 = vmatpush1.msra.mxu0 0.0
    %1912 = vmatprep.subr.mxu0 0.0
    %1913 = vmatpush1.msra.mxu0 0.0
    %1914 = vmatprep.subr.mxu0 0.0
    %1915 = vmatpush1.msra.mxu0 0.0
    %1916 = vmatprep.subr.mxu0 0.0
    %1917 = vmatpush1.msra.mxu0 0.0
    %1918 = vmatprep.subr.mxu0 0.0
    %1919 = vmatpush1.msra.mxu0 0.0
    %1920 = vmatprep.subr.mxu0 0.0
    %1921 = vmatpush1.msra.mxu0 0.0
    %1922 = vmatprep.subr.mxu0 0.0
    %1923 = vmatpush1.msra.mxu0 0.0
    %1924 = vmatprep.subr.mxu0 0.0
    %1925 = vmatpush1.msra.mxu0 0.0
    %1926 = vmatprep.subr.mxu0 0.0
    %1927 = vmatpush1.msra.mxu0 0.0
    %1928 = vmatprep.subr.mxu0 0.0
    %1929 = vmatpush1.msra.mxu0 0.0
    %1930 = vmatprep.subr.mxu0 0.0
    %1931 = vmatpush1.msra.mxu0 0.0
    %1932 = vmatprep.subr.mxu0 0.0
    %1933 = vmatpush1.msra.mxu0 %v1897
    %1934 = vmatprep.subr.mxu0 0.0
    %1935 = vmatpush2.msra.mxu0 0.0
    %1936 = vmatprep.subr.mxu0 0.0
    %1937 = vmatpush2.msra.mxu0 0.0
    %1938 = vmatprep.subr.mxu0 0.0
    %1939 = vmatpush2.msra.mxu0 0.0
    %1940 = vmatprep.subr.mxu0 0.0
    %1941 = vmatpush2.msra.mxu0 0.0
    %1942 = vmatprep.subr.mxu0 0.0
    %1943 = vmatpush2.msra.mxu0 0.0
    %1944 = vmatprep.subr.mxu0 0.0
    %1945 = vmatpush2.msra.mxu0 0.0
    %1946 = vmatprep.subr.mxu0 0.0
    %1947 = vmatpush2.msra.mxu0 0.0
    %1948 = vmatprep.subr.mxu0 0.0
    %1949 = vmatpush2.msra.mxu0 0.0
    %1950 = vmatprep.subr.mxu0 0.0
    %1951 = vmatpush2.msra.mxu0 0.0
    %1952 = vmatprep.subr.mxu0 0.0
    %1953 = vmatpush2.msra.mxu0 0.0
    %1954 = vmatprep.subr.mxu0 0.0
    %1955 = vmatpush2.msra.mxu0 0.0
    %1956 = vmatprep.subr.mxu0 0.0
    %1957 = vmatpush2.msra.mxu0 0.0
    %1958 = vmatprep.subr.mxu0 0.0
    %1959 = vmatpush2.msra.mxu0 0.0
    %1960 = vmatprep.subr.mxu0 0.0
    %1961 = vmatpush2.msra.mxu0 0.0
    %1962 = vmatprep.subr.mxu0 0.0
    %1963 = vmatpush2.msra.mxu0 0.0
    %1964 = vmatprep.subr.mxu0 0.0
    %1965 = vmatpush2.msra.mxu0 0.0
    %1966 = vmatprep.mubr.f32.mxu0 0.0
    %1967 = vmatmul.mubr.f32.gmra.mxu0 %v1900
    %v1968 = vpop.f32.mrf.mxu0
    %v1969 = vadd.f32 0.0, %v1968
    %v1970 = vpop.f32.mrf.mxu0
    %1971 = vdwg.mxu0
    %v1973 = vsel %vm818, %v1893, 0
    %v1976 = vsel %vm818, %v1969, 0
    %1978 = vmatprep.subr.mxu0 0.0
    %1979 = vmatpush1.msra.mxu0 0.0
    %1980 = vmatprep.subr.mxu0 0.0
    %1981 = vmatpush1.msra.mxu0 0.0
    %1982 = vmatprep.subr.mxu0 0.0
    %1983 = vmatpush1.msra.mxu0 0.0
    %1984 = vmatprep.subr.mxu0 0.0
    %1985 = vmatpush1.msra.mxu0 0.0
    %1986 = vmatprep.subr.mxu0 0.0
    %1987 = vmatpush1.msra.mxu0 0.0
    %1988 = vmatprep.subr.mxu0 0.0
    %1989 = vmatpush1.msra.mxu0 0.0
    %1990 = vmatprep.subr.mxu0 0.0
    %1991 = vmatpush1.msra.mxu0 0.0
    %1992 = vmatprep.subr.mxu0 0.0
    %1993 = vmatpush1.msra.mxu0 0.0
    %1994 = vmatprep.subr.mxu0 0.0
    %1995 = vmatpush1.msra.mxu0 0.0
    %1996 = vmatprep.subr.mxu0 0.0
    %1997 = vmatpush1.msra.mxu0 0.0
    %1998 = vmatprep.subr.mxu0 0.0
    %1999 = vmatpush1.msra.mxu0 0.0
    %2000 = vmatprep.subr.mxu0 0.0
    %2001 = vmatpush1.msra.mxu0 0.0
    %2002 = vmatprep.subr.mxu0 0.0
    %2003 = vmatpush1.msra.mxu0 0.0
    %2004 = vmatprep.subr.mxu0 0.0
    %2005 = vmatpush1.msra.mxu0 0.0
    %2006 = vmatprep.subr.mxu0 0.0
    %2007 = vmatpush1.msra.mxu0 0.0
    %2008 = vmatprep.subr.mxu0 0.0
    %2009 = vmatpush1.msra.mxu0 %v813
    %2010 = vmatprep.subr.mxu0 0.0
    %2011 = vmatpush2.msra.mxu0 0.0
    %2012 = vmatprep.subr.mxu0 0.0
    %2013 = vmatpush2.msra.mxu0 0.0
    %2014 = vmatprep.subr.mxu0 0.0
    %2015 = vmatpush2.msra.mxu0 0.0
    %2016 = vmatprep.subr.mxu0 0.0
    %2017 = vmatpush2.msra.mxu0 0.0
    %2018 = vmatprep.subr.mxu0 0.0
    %2019 = vmatpush2.msra.mxu0 0.0
    %2020 = vmatprep.subr.mxu0 0.0
    %2021 = vmatpush2.msra.mxu0 0.0
    %2022 = vmatprep.subr.mxu0 0.0
    %2023 = vmatpush2.msra.mxu0 0.0
    %2024 = vmatprep.subr.mxu0 0.0
    %2025 = vmatpush2.msra.mxu0 0.0
    %2026 = vmatprep.subr.mxu0 0.0
    %2027 = vmatpush2.msra.mxu0 0.0
    %2028 = vmatprep.subr.mxu0 0.0
    %2029 = vmatpush2.msra.mxu0 0.0
    %2030 = vmatprep.subr.mxu0 0.0
    %2031 = vmatpush2.msra.mxu0 0.0
    %2032 = vmatprep.subr.mxu0 0.0
    %2033 = vmatpush2.msra.mxu0 0.0
    %2034 = vmatprep.subr.mxu0 0.0
    %2035 = vmatpush2.msra.mxu0 0.0
    %2036 = vmatprep.subr.mxu0 0.0
    %2037 = vmatpush2.msra.mxu0 0.0
    %2038 = vmatprep.subr.mxu0 0.0
    %2039 = vmatpush2.msra.mxu0 0.0
    %2040 = vmatprep.subr.mxu0 0.0
    %2041 = vmatpush2.msra.mxu0 0.0
    %2042 = vmatprep.mubr.f32.mxu0 0.0
    %2043 = vmatmul.mubr.f32.gmra.mxu0 %v1973
    %v2044 = vpop.f32.mrf.mxu0
    %v2045 = vadd.f32 0.0, %v2044
    %v2046 = vpop.f32.mrf.mxu0
    %2047 = vmatprep.mubr.f32.mxu0 0.0
    %2048 = vmatmul.mubr.f32.gmra.mxu0 %v1976
    %v2049 = vpop.f32.mrf.mxu0
    %v2050 = vadd.f32 0.0, %v2049
    %v2051 = vpop.f32.mrf.mxu0
    %2052 = vdwg.mxu0
    %v2053 = vadd.f32 %v1632, %v2045
    %v2054 = vadd.f32 %v1637, %v2050
    %2055 = vrot.lane.b32.xlu0 %v803, 104
    %v2056 = vpop.permute.xlu0 %2055
    %2057 = vrot.lane.b32.xlu0 %v803, 72
    %v2058 = vpop.permute.xlu0 %2057
    %v2059 = vsel %vm818, %v2056, 0
    %v2061 = vsel %vm818, %v2058, 0
    %2063 = vmatprep.subr.mxu0 0.0
    %2064 = vmatpush1.xpose.msra.mxu0 0.0
    %2065 = vmatprep.subr.mxu0 0.0
    %2066 = vmatpush1.xpose.msra.mxu0 0.0
    %2067 = vmatprep.subr.mxu0 0.0
    %2068 = vmatpush1.xpose.msra.mxu0 0.0
    %2069 = vmatprep.subr.mxu0 0.0
    %2070 = vmatpush1.xpose.msra.mxu0 0.0
    %2071 = vmatprep.subr.mxu0 0.0
    %2072 = vmatpush1.xpose.msra.mxu0 0.0
    %2073 = vmatprep.subr.mxu0 0.0
    %2074 = vmatpush1.xpose.msra.mxu0 0.0
    %2075 = vmatprep.subr.mxu0 0.0
    %2076 = vmatpush1.xpose.msra.mxu0 0.0
    %2077 = vmatprep.subr.mxu0 0.0
    %2078 = vmatpush1.xpose.msra.mxu0 0.0
    %2079 = vmatprep.subr.mxu0 0.0
    %2080 = vmatpush1.xpose.msra.mxu0 0.0
    %2081 = vmatprep.subr.mxu0 0.0
    %2082 = vmatpush1.xpose.msra.mxu0 0.0
    %2083 = vmatprep.subr.mxu0 0.0
    %2084 = vmatpush1.xpose.msra.mxu0 0.0
    %2085 = vmatprep.subr.mxu0 0.0
    %2086 = vmatpush1.xpose.msra.mxu0 0.0
    %2087 = vmatprep.subr.mxu0 0.0
    %2088 = vmatpush1.xpose.msra.mxu0 0.0
    %2089 = vmatprep.subr.mxu0 0.0
    %2090 = vmatpush1.xpose.msra.mxu0 0.0
    %2091 = vmatprep.subr.mxu0 0.0
    %2092 = vmatpush1.xpose.msra.mxu0 0.0
    %2093 = vmatprep.subr.mxu0 0.0
    %2094 = vmatpush1.xpose.msra.mxu0 %v2061
    %2095 = vmatprep.subr.mxu0 0.0
    %2096 = vmatpush2.xpose.msra.mxu0 0.0
    %2097 = vmatprep.subr.mxu0 0.0
    %2098 = vmatpush2.xpose.msra.mxu0 0.0
    %2099 = vmatprep.subr.mxu0 0.0
    %2100 = vmatpush2.xpose.msra.mxu0 0.0
    %2101 = vmatprep.subr.mxu0 0.0
    %2102 = vmatpush2.xpose.msra.mxu0 0.0
    %2103 = vmatprep.subr.mxu0 0.0
    %2104 = vmatpush2.xpose.msra.mxu0 0.0
    %2105 = vmatprep.subr.mxu0 0.0
    %2106 = vmatpush2.xpose.msra.mxu0 0.0
    %2107 = vmatprep.subr.mxu0 0.0
    %2108 = vmatpush2.xpose.msra.mxu0 0.0
    %2109 = vmatprep.subr.mxu0 0.0
    %2110 = vmatpush2.xpose.msra.mxu0 0.0
    %2111 = vmatprep.subr.mxu0 0.0
    %2112 = vmatpush2.xpose.msra.mxu0 0.0
    %2113 = vmatprep.subr.mxu0 0.0
    %2114 = vmatpush2.xpose.msra.mxu0 0.0
    %2115 = vmatprep.subr.mxu0 0.0
    %2116 = vmatpush2.xpose.msra.mxu0 0.0
    %2117 = vmatprep.subr.mxu0 0.0
    %2118 = vmatpush2.xpose.msra.mxu0 0.0
    %2119 = vmatprep.subr.mxu0 0.0
    %2120 = vmatpush2.xpose.msra.mxu0 0.0
    %2121 = vmatprep.subr.mxu0 0.0
    %2122 = vmatpush2.xpose.msra.mxu0 0.0
    %2123 = vmatprep.subr.mxu0 0.0
    %2124 = vmatpush2.xpose.msra.mxu0 0.0
    %2125 = vmatprep.subr.mxu0 0.0
    %2126 = vmatpush2.xpose.msra.mxu0 0.0
    %2127 = vmatprep.mubr.f32.mxu0 0.0
    %2128 = vmatmul.mubr.f32.gmra.mxu0 %v2059
    %v2129 = vpop.f32.mrf.mxu0
    %v2130 = vadd.f32 0.0, %v2129
    %v2131 = vpop.f32.mrf.mxu0
    %2132 = vdwg.mxu0
    %2133 = vrot.lane.b32.xlu0 %v808, 104
    %v2134 = vpop.permute.xlu0 %2133
    %2135 = vrot.lane.b32.xlu0 %v808, 72
    %v2136 = vpop.permute.xlu0 %2135
    %v2137 = vsel %vm818, %v2134, 0
    %v2139 = vsel %vm818, %v2136, 0
    %2141 = vmatprep.subr.mxu0 0.0
    %2142 = vmatpush1.xpose.msra.mxu0 0.0
    %2143 = vmatprep.subr.mxu0 0.0
    %2144 = vmatpush1.xpose.msra.mxu0 0.0
    %2145 = vmatprep.subr.mxu0 0.0
    %2146 = vmatpush1.xpose.msra.mxu0 0.0
    %2147 = vmatprep.subr.mxu0 0.0
    %2148 = vmatpush1.xpose.msra.mxu0 0.0
    %2149 = vmatprep.subr.mxu0 0.0
    %2150 = vmatpush1.xpose.msra.mxu0 0.0
    %2151 = vmatprep.subr.mxu0 0.0
    %2152 = vmatpush1.xpose.msra.mxu0 0.0
    %2153 = vmatprep.subr.mxu0 0.0
    %2154 = vmatpush1.xpose.msra.mxu0 0.0
    %2155 = vmatprep.subr.mxu0 0.0
    %2156 = vmatpush1.xpose.msra.mxu0 0.0
    %2157 = vmatprep.subr.mxu0 0.0
    %2158 = vmatpush1.xpose.msra.mxu0 0.0
    %2159 = vmatprep.subr.mxu0 0.0
    %2160 = vmatpush1.xpose.msra.mxu0 0.0
    %2161 = vmatprep.subr.mxu0 0.0
    %2162 = vmatpush1.xpose.msra.mxu0 0.0
    %2163 = vmatprep.subr.mxu0 0.0
    %2164 = vmatpush1.xpose.msra.mxu0 0.0
    %2165 = vmatprep.subr.mxu0 0.0
    %2166 = vmatpush1.xpose.msra.mxu0 0.0
    %2167 = vmatprep.subr.mxu0 0.0
    %2168 = vmatpush1.xpose.msra.mxu0 0.0
    %2169 = vmatprep.subr.mxu0 0.0
    %2170 = vmatpush1.xpose.msra.mxu0 0.0
    %2171 = vmatprep.subr.mxu0 0.0
    %2172 = vmatpush1.xpose.msra.mxu0 %v2139
    %2173 = vmatprep.subr.mxu0 0.0
    %2174 = vmatpush2.xpose.msra.mxu0 0.0
    %2175 = vmatprep.subr.mxu0 0.0
    %2176 = vmatpush2.xpose.msra.mxu0 0.0
    %2177 = vmatprep.subr.mxu0 0.0
    %2178 = vmatpush2.xpose.msra.mxu0 0.0
    %2179 = vmatprep.subr.mxu0 0.0
    %2180 = vmatpush2.xpose.msra.mxu0 0.0
    %2181 = vmatprep.subr.mxu0 0.0
    %2182 = vmatpush2.xpose.msra.mxu0 0.0
    %2183 = vmatprep.subr.mxu0 0.0
    %2184 = vmatpush2.xpose.msra.mxu0 0.0
    %2185 = vmatprep.subr.mxu0 0.0
    %2186 = vmatpush2.xpose.msra.mxu0 0.0
    %2187 = vmatprep.subr.mxu0 0.0
    %2188 = vmatpush2.xpose.msra.mxu0 0.0
    %2189 = vmatprep.subr.mxu0 0.0
    %2190 = vmatpush2.xpose.msra.mxu0 0.0
    %2191 = vmatprep.subr.mxu0 0.0
    %2192 = vmatpush2.xpose.msra.mxu0 0.0
    %2193 = vmatprep.subr.mxu0 0.0
    %2194 = vmatpush2.xpose.msra.mxu0 0.0
    %2195 = vmatprep.subr.mxu0 0.0
    %2196 = vmatpush2.xpose.msra.mxu0 0.0
    %2197 = vmatprep.subr.mxu0 0.0
    %2198 = vmatpush2.xpose.msra.mxu0 0.0
    %2199 = vmatprep.subr.mxu0 0.0
    %2200 = vmatpush2.xpose.msra.mxu0 0.0
    %2201 = vmatprep.subr.mxu0 0.0
    %2202 = vmatpush2.xpose.msra.mxu0 0.0
    %2203 = vmatprep.subr.mxu0 0.0
    %2204 = vmatpush2.xpose.msra.mxu0 0.0
    %2205 = vmatprep.mubr.f32.mxu0 0.0
    %2206 = vmatmul.mubr.f32.gmra.mxu0 %v2137
    %v2207 = vpop.f32.mrf.mxu0
    %v2208 = vadd.f32 0.0, %v2207
    %v2209 = vpop.f32.mrf.mxu0
    %2210 = vdwg.mxu0
    %v2211 = vsel %vm818, %v2130, -inf
    %2212 = vmax.xlane.f32.xlu0 %v2211
    %v2213 = vpop.xlane.xlu0 %2212
    %v2214 = vsel %vm818, %v2208, -inf
    %2215 = vmax.xlane.f32.xlu0 %v2214
    %v2216 = vpop.xlane.xlu0 %2215
    %v2217 = vsub.f32 %v2130, %v2213
    %v2218 = vsub.f32 %v2208, %v2216
    %v2219 = vmul.f32 %v2217, 1.442695
    %v2220 = vpow.pop %v2219
    %v2221 = vmul.f32 %v2218, 1.442695
    %v2222 = vpow.pop %v2221
    %v2223 = vsel %vm818, %v2220, 0.0
    %2224 = vadd.xlane.f32.xlu0 %v2223
    %v2225 = vpop.xlane.xlu0 %2224
    %v2226 = vsel %vm818, %v2222, 0.0
    %2227 = vadd.xlane.f32.xlu0 %v2226
    %v2228 = vpop.xlane.xlu0 %2227
    %v2229 = vrcp.pop %v2225
    %v2230 = vmul.f32 1.0, %v2229
    %v2231 = vrcp.pop %v2228
    %v2232 = vmul.f32 1.0, %v2231
    %v2233 = vmul.f32 %v2220, %v2230
    %v2234 = vmul.f32 %v2222, %v2232
    %2235 = vrot.lane.b32.xlu0 %v803, 40
    %v2236 = vpop.permute.xlu0 %2235
    %v2239 = vsel %vm818, %v2233, 0
    %2241 = vmatprep.subr.mxu0 0.0
    %2242 = vmatpush1.msra.mxu0 0.0
    %2243 = vmatprep.subr.mxu0 0.0
    %2244 = vmatpush1.msra.mxu0 0.0
    %2245 = vmatprep.subr.mxu0 0.0
    %2246 = vmatpush1.msra.mxu0 0.0
    %2247 = vmatprep.subr.mxu0 0.0
    %2248 = vmatpush1.msra.mxu0 0.0
    %2249 = vmatprep.subr.mxu0 0.0
    %2250 = vmatpush1.msra.mxu0 0.0
    %2251 = vmatprep.subr.mxu0 0.0
    %2252 = vmatpush1.msra.mxu0 0.0
    %2253 = vmatprep.subr.mxu0 0.0
    %2254 = vmatpush1.msra.mxu0 0.0
    %2255 = vmatprep.subr.mxu0 0.0
    %2256 = vmatpush1.msra.mxu0 0.0
    %2257 = vmatprep.subr.mxu0 0.0
    %2258 = vmatpush1.msra.mxu0 0.0
    %2259 = vmatprep.subr.mxu0 0.0
    %2260 = vmatpush1.msra.mxu0 0.0
    %2261 = vmatprep.subr.mxu0 0.0
    %2262 = vmatpush1.msra.mxu0 0.0
    %2263 = vmatprep.subr.mxu0 0.0
    %2264 = vmatpush1.msra.mxu0 0.0
    %2265 = vmatprep.subr.mxu0 0.0
    %2266 = vmatpush1.msra.mxu0 0.0
    %2267 = vmatprep.subr.mxu0 0.0
    %2268 = vmatpush1.msra.mxu0 0.0
    %2269 = vmatprep.subr.mxu0 0.0
    %2270 = vmatpush1.msra.mxu0 0.0
    %2271 = vmatprep.subr.mxu0 0.0
    %2272 = vmatpush1.msra.mxu0 %v2236
    %2273 = vmatprep.subr.mxu0 0.0
    %2274 = vmatpush2.msra.mxu0 0.0
    %2275 = vmatprep.subr.mxu0 0.0
    %2276 = vmatpush2.msra.mxu0 0.0
    %2277 = vmatprep.subr.mxu0 0.0
    %2278 = vmatpush2.msra.mxu0 0.0
    %2279 = vmatprep.subr.mxu0 0.0
    %2280 = vmatpush2.msra.mxu0 0.0
    %2281 = vmatprep.subr.mxu0 0.0
    %2282 = vmatpush2.msra.mxu0 0.0
    %2283 = vmatprep.subr.mxu0 0.0
    %2284 = vmatpush2.msra.mxu0 0.0
    %2285 = vmatprep.subr.mxu0 0.0
    %2286 = vmatpush2.msra.mxu0 0.0
    %2287 = vmatprep.subr.mxu0 0.0
    %2288 = vmatpush2.msra.mxu0 0.0
    %2289 = vmatprep.subr.mxu0 0.0
    %2290 = vmatpush2.msra.mxu0 0.0
    %2291 = vmatprep.subr.mxu0 0.0
    %2292 = vmatpush2.msra.mxu0 0.0
    %2293 = vmatprep.subr.mxu0 0.0
    %2294 = vmatpush2.msra.mxu0 0.0
    %2295 = vmatprep.subr.mxu0 0.0
    %2296 = vmatpush2.msra.mxu0 0.0
    %2297 = vmatprep.subr.mxu0 0.0
    %2298 = vmatpush2.msra.mxu0 0.0
    %2299 = vmatprep.subr.mxu0 0.0
    %2300 = vmatpush2.msra.mxu0 0.0
    %2301 = vmatprep.subr.mxu0 0.0
    %2302 = vmatpush2.msra.mxu0 0.0
    %2303 = vmatprep.subr.mxu0 0.0
    %2304 = vmatpush2.msra.mxu0 0.0
    %2305 = vmatprep.mubr.f32.mxu0 0.0
    %2306 = vmatmul.mubr.f32.gmra.mxu0 %v2239
    %v2307 = vpop.f32.mrf.mxu0
    %v2308 = vadd.f32 0.0, %v2307
    %v2309 = vpop.f32.mrf.mxu0
    %2310 = vdwg.mxu0
    %2311 = vrot.lane.b32.xlu0 %v808, 40
    %v2312 = vpop.permute.xlu0 %2311
    %v2315 = vsel %vm818, %v2234, 0
    %2317 = vmatprep.subr.mxu0 0.0
    %2318 = vmatpush1.msra.mxu0 0.0
    %2319 = vmatprep.subr.mxu0 0.0
    %2320 = vmatpush1.msra.mxu0 0.0
    %2321 = vmatprep.subr.mxu0 0.0
    %2322 = vmatpush1.msra.mxu0 0.0
    %2323 = vmatprep.subr.mxu0 0.0
    %2324 = vmatpush1.msra.mxu0 0.0
    %2325 = vmatprep.subr.mxu0 0.0
    %2326 = vmatpush1.msra.mxu0 0.0
    %2327 = vmatprep.subr.mxu0 0.0
    %2328 = vmatpush1.msra.mxu0 0.0
    %2329 = vmatprep.subr.mxu0 0.0
    %2330 = vmatpush1.msra.mxu0 0.0
    %2331 = vmatprep.subr.mxu0 0.0
    %2332 = vmatpush1.msra.mxu0 0.0
    %2333 = vmatprep.subr.mxu0 0.0
    %2334 = vmatpush1.msra.mxu0 0.0
    %2335 = vmatprep.subr.mxu0 0.0
    %2336 = vmatpush1.msra.mxu0 0.0
    %2337 = vmatprep.subr.mxu0 0.0
    %2338 = vmatpush1.msra.mxu0 0.0
    %2339 = vmatprep.subr.mxu0 0.0
    %2340 = vmatpush1.msra.mxu0 0.0
    %2341 = vmatprep.subr.mxu0 0.0
    %2342 = vmatpush1.msra.mxu0 0.0
    %2343 = vmatprep.subr.mxu0 0.0
    %2344 = vmatpush1.msra.mxu0 0.0
    %2345 = vmatprep.subr.mxu0 0.0
    %2346 = vmatpush1.msra.mxu0 0.0
    %2347 = vmatprep.subr.mxu0 0.0
    %2348 = vmatpush1.msra.mxu0 %v2312
    %2349 = vmatprep.subr.mxu0 0.0
    %2350 = vmatpush2.msra.mxu0 0.0
    %2351 = vmatprep.subr.mxu0 0.0
    %2352 = vmatpush2.msra.mxu0 0.0
    %2353 = vmatprep.subr.mxu0 0.0
    %2354 = vmatpush2.msra.mxu0 0.0
    %2355 = vmatprep.subr.mxu0 0.0
    %2356 = vmatpush2.msra.mxu0 0.0
    %2357 = vmatprep.subr.mxu0 0.0
    %2358 = vmatpush2.msra.mxu0 0.0
    %2359 = vmatprep.subr.mxu0 0.0
    %2360 = vmatpush2.msra.mxu0 0.0
    %2361 = vmatprep.subr.mxu0 0.0
    %2362 = vmatpush2.msra.mxu0 0.0
    %2363 = vmatprep.subr.mxu0 0.0
    %2364 = vmatpush2.msra.mxu0 0.0
    %2365 = vmatprep.subr.mxu0 0.0
    %2366 = vmatpush2.msra.mxu0 0.0
    %2367 = vmatprep.subr.mxu0 0.0
    %2368 = vmatpush2.msra.mxu0 0.0
    %2369 = vmatprep.subr.mxu0 0.0
    %2370 = vmatpush2.msra.mxu0 0.0
    %2371 = vmatprep.subr.mxu0 0.0
    %2372 = vmatpush2.msra.mxu0 0.0
    %2373 = vmatprep.subr.mxu0 0.0
    %2374 = vmatpush2.msra.mxu0 0.0
    %2375 = vmatprep.subr.mxu0 0.0
    %2376 = vmatpush2.msra.mxu0 0.0
    %2377 = vmatprep.subr.mxu0 0.0
    %2378 = vmatpush2.msra.mxu0 0.0
    %2379 = vmatprep.subr.mxu0 0.0
    %2380 = vmatpush2.msra.mxu0 0.0
    %2381 = vmatprep.mubr.f32.mxu0 0.0
    %2382 = vmatmul.mubr.f32.gmra.mxu0 %v2315
    %v2383 = vpop.f32.mrf.mxu0
    %v2384 = vadd.f32 0.0, %v2383
    %v2385 = vpop.f32.mrf.mxu0
    %2386 = vdwg.mxu0
    %v2388 = vsel %vm818, %v2308, 0
    %v2391 = vsel %vm818, %v2384, 0
    %2393 = vmatprep.subr.mxu0 0.0
    %2394 = vmatpush1.msra.mxu0 0.0
    %2395 = vmatprep.subr.mxu0 0.0
    %2396 = vmatpush1.msra.mxu0 0.0
    %2397 = vmatprep.subr.mxu0 0.0
    %2398 = vmatpush1.msra.mxu0 0.0
    %2399 = vmatprep.subr.mxu0 0.0
    %2400 = vmatpush1.msra.mxu0 0.0
    %2401 = vmatprep.subr.mxu0 0.0
    %2402 = vmatpush1.msra.mxu0 0.0
    %2403 = vmatprep.subr.mxu0 0.0
    %2404 = vmatpush1.msra.mxu0 0.0
    %2405 = vmatprep.subr.mxu0 0.0
    %2406 = vmatpush1.msra.mxu0 0.0
    %2407 = vmatprep.subr.mxu0 0.0
    %2408 = vmatpush1.msra.mxu0 0.0
    %2409 = vmatprep.subr.mxu0 0.0
    %2410 = vmatpush1.msra.mxu0 0.0
    %2411 = vmatprep.subr.mxu0 0.0
    %2412 = vmatpush1.msra.mxu0 0.0
    %2413 = vmatprep.subr.mxu0 0.0
    %2414 = vmatpush1.msra.mxu0 0.0
    %2415 = vmatprep.subr.mxu0 0.0
    %2416 = vmatpush1.msra.mxu0 0.0
    %2417 = vmatprep.subr.mxu0 0.0
    %2418 = vmatpush1.msra.mxu0 0.0
    %2419 = vmatprep.subr.mxu0 0.0
    %2420 = vmatpush1.msra.mxu0 0.0
    %2421 = vmatprep.subr.mxu0 0.0
    %2422 = vmatpush1.msra.mxu0 0.0
    %2423 = vmatprep.subr.mxu0 0.0
    %2424 = vmatpush1.msra.mxu0 %v814
    %2425 = vmatprep.subr.mxu0 0.0
    %2426 = vmatpush2.msra.mxu0 0.0
    %2427 = vmatprep.subr.mxu0 0.0
    %2428 = vmatpush2.msra.mxu0 0.0
    %2429 = vmatprep.subr.mxu0 0.0
    %2430 = vmatpush2.msra.mxu0 0.0
    %2431 = vmatprep.subr.mxu0 0.0
    %2432 = vmatpush2.msra.mxu0 0.0
    %2433 = vmatprep.subr.mxu0 0.0
    %2434 = vmatpush2.msra.mxu0 0.0
    %2435 = vmatprep.subr.mxu0 0.0
    %2436 = vmatpush2.msra.mxu0 0.0
    %2437 = vmatprep.subr.mxu0 0.0
    %2438 = vmatpush2.msra.mxu0 0.0
    %2439 = vmatprep.subr.mxu0 0.0
    %2440 = vmatpush2.msra.mxu0 0.0
    %2441 = vmatprep.subr.mxu0 0.0
    %2442 = vmatpush2.msra.mxu0 0.0
    %2443 = vmatprep.subr.mxu0 0.0
    %2444 = vmatpush2.msra.mxu0 0.0
    %2445 = vmatprep.subr.mxu0 0.0
    %2446 = vmatpush2.msra.mxu0 0.0
    %2447 = vmatprep.subr.mxu0 0.0
    %2448 = vmatpush2.msra.mxu0 0.0
    %2449 = vmatprep.subr.mxu0 0.0
    %2450 = vmatpush2.msra.mxu0 0.0
    %2451 = vmatprep.subr.mxu0 0.0
    %2452 = vmatpush2.msra.mxu0 0.0
    %2453 = vmatprep.subr.mxu0 0.0
    %2454 = vmatpush2.msra.mxu0 0.0
    %2455 = vmatprep.subr.mxu0 0.0
    %2456 = vmatpush2.msra.mxu0 0.0
    %2457 = vmatprep.mubr.f32.mxu0 0.0
    %2458 = vmatmul.mubr.f32.gmra.mxu0 %v2388
    %v2459 = vpop.f32.mrf.mxu0
    %v2460 = vadd.f32 0.0, %v2459
    %v2461 = vpop.f32.mrf.mxu0
    %2462 = vmatprep.mubr.f32.mxu0 0.0
    %2463 = vmatmul.mubr.f32.gmra.mxu0 %v2391
    %v2464 = vpop.f32.mrf.mxu0
    %v2465 = vadd.f32 0.0, %v2464
    %v2466 = vpop.f32.mrf.mxu0
    %2467 = vdwg.mxu0
    %v2468 = vadd.f32 %v2053, %v2460
    %v2469 = vadd.f32 %v2054, %v2465
    %v2470 = vld [vmem:[%s14] sm:$0x1]
    %v2472 = vlaneseq
    %v2473 = vshrl.u32 %v2472, 7
    %v2474 = vsub.s32 0, %v2473
    %v2475 = vrot.slane %v2470, %v2474
    %v2477 = vadd.f32 %v2468, %v2475
    %v2478 = vadd.f32 %v2469, %v2475
    %2479 = vst.msk [vmem:[#allocation8] sm:$0xff] %vm91, %v2477
    %2480 = vst.msk [vmem:[#allocation8 + $0x8] sm:$0xff] %vm91, %v2478
    // Predicated region
    $region70: #{tpu_custom_call.1} parent=1 // pred_check
      _
    $region71: #{tpu_custom_call.1} parent=1 // pred_check_branch
      %2482 = sbr.rel (0) target = $region73
    $region72: #{tpu_custom_call.1} parent=1 // pred_region
      %s2484 = ssub.s32 256, 256
      %2485 = vsyncadd [#allocation5], %s2484
      %s2486 = sshll.u32 [#allocation8], 4
      %s2487 = int_to_ptr.vmem [resolvable:$true] %s2486
      %2492 = dma.vmem_to_hbm [thread:$0]  %s2487, 256, %s15, [#allocation5], 128, 128, 8
    $region73: #{tpu_custom_call.1} parent=1 // pred_fallthru
      _
    // Predicated region
    $region74: #{tpu_custom_call.1} parent=1 // pred_check
      _
    $region75: #{tpu_custom_call.1} parent=1 // pred_check_branch
      %2494 = sbr.rel (0) target = $region77
    $region76: #{tpu_custom_call.1} parent=1 // pred_region
      %2495 = dma.done [#allocation5], 256
    $region77: #{tpu_custom_call.1} parent=1 // pred_fallthru
      _
    %2496 = vsyncpa [#allocation4], 1
    %2497 = vsyncpa [#allocation7], 1
    %2498 = vsyncpa [#allocation5], 1

</llo_original>
